<compile_context>
chip_gen: v6e
topology: v6e:2x2x1
jax: 0.10.0
libtpu: 0.0.40
codegen_flags: <defaults>
</compile_context>

<pallas_src>
import functools

import jax
import jax.numpy as jnp
from jax import lax
from jax.experimental import pallas as pl
from jax.experimental.pallas import tpu as pltpu

EPS = 1e-5   # PyTorch BatchNorm2d default eps
LANE = 128


def _round_up(v, m):
    return (v + m - 1) // m * m


def _pick_tile(total, cap):
    """Largest multiple-of-128 divisor of `total` (itself a multiple of 128) that is <= cap."""
    best = LANE
    t = LANE
    while t <= min(total, cap):
        if total % t == 0:
            best = t
        t += LANE
    return best


# ---------------------------------------------------------------------------
# Pallas kernels
# ---------------------------------------------------------------------------
def _conv_stats_kernel(xt_ref, wt_ref, stats_ref):
    """Stats-only pass: conv tile (recomputed in pass 2) -> per-channel [sum, sumsq].

    xt_ref:    (K_PAD, TM)    bf16  transposed im2col tile (K on sublanes, pixels on lanes)
    wt_ref:    (C_PAD, K_PAD) bf16  reshaped conv weight (output channels on sublanes)
    stats_ref: (1, C_PAD, 2)  f32   [sum, sum of squares] over this tile's pixels
    """
    acc = jnp.dot(wt_ref[...], xt_ref[...], preferred_element_type=jnp.float32)  # (C_PAD, TM)
    stats_ref[0, :, 0:1] = jnp.sum(acc, axis=1, keepdims=True)
    stats_ref[0, :, 1:2] = jnp.sum(acc * acc, axis=1, keepdims=True)


def _conv_cbn_relu_kernel(xt_ref, wt_ref, a_ref, b_ref, o_ref, *, c_out):
    """Fused conv (recompute) + conditional BN (a*y + b) + ReLU, lane-dense unpadded output.

    a_ref/b_ref: (1, C_PAD, 1) f32  per-sample scale/shift (gamma[c]*inv_std, beta[c]-a*mean)
    o_ref:       (1, C_out, TM) f32  channels on sublanes, pixels on lanes (NC(HW) layout)
    """
    acc = jnp.dot(wt_ref[...], xt_ref[...], preferred_element_type=jnp.float32)  # (C_PAD, TM)
    a = a_ref[0]                                   # (C_PAD, 1), broadcasts along lanes
    b = b_ref[0]
    y = jnp.maximum(acc * a + b, 0.0)
    o_ref[0] = y[:c_out, :].astype(o_ref.dtype)    # drop padded channels before the store


# ---------------------------------------------------------------------------
# Wrapper
# ---------------------------------------------------------------------------
def up_conv2d_block_cbn(x, c, params, *, kernel_size, stride=1, padding=0):
    if stride != 1:
        # TODO(synk): stride != 1 is not supported by the fused conv kernel (module default is 1).
        raise NotImplementedError("fused conv kernel supports stride=1 only")

    conv_w = params["conv_w"]          # (C_out, C_in, KH, KW)
    gamma_emb = params["gamma_emb"]    # (n_class, C_out)
    beta_emb = params["beta_emb"]      # (n_class, C_out)
    # NOTE: params["conv_b"] is intentionally unused: a per-channel constant added before
    # training-mode BatchNorm cancels exactly in (y - mean); the forward output is unchanged.
    # TODO(synk): fold conv_b back in if a running-stats / eval-mode BN path is ever added.

    N, C_in, _, _ = x.shape
    C_out = conv_w.shape[0]
    KH = KW = kernel_size
    C_PAD = _round_up(C_out, LANE)
    K = KH * KW * C_in
    K_PAD = _round_up(K, 8)

    # 1) nearest-neighbour upsample x2 + zero pad (tiny XLA ops on the raw input)
    x_up = jnp.repeat(jnp.repeat(x, 2, axis=2), 2, axis=3)
    x_pad = jnp.pad(x_up, ((0, 0), (0, 0), (padding, padding), (padding, padding)))
    x_nhwc = jnp.transpose(x_pad, (0, 2, 3, 1))                     # (N, Hp, Wp, C_in)
    Hp, Wp = x_nhwc.shape[1], x_nhwc.shape[2]
    OH = Hp - KH + 1
    OW = Wp - KW + 1
    S = OH * OW                       # per-sample output pixels
    M = N * S                         # true pixel count for BN statistics
    S_PAD = _round_up(S, LANE)        # per-sample pixels, padded for lane-dense tiles

    # 2) full KH*KW im2col, transposed to (K, pixels): the conv is a single matmul with
    #    contraction K = KH*KW*C_in, pixels on lanes -> lane-dense loads, matmul and stores.
    cols = [x_nhwc[:, kh:kh + OH, kw:kw + OW, :]                    # each (N, OH, OW, C_in)
            for kh in range(KH) for kw in range(KW)]
    patches = jnp.stack(cols, axis=0)                               # (KH*KW, N, OH, OW, C_in)
    patches = jnp.transpose(patches, (0, 4, 1, 2, 3))               # (KH*KW, C_in, N, OH, OW)
    x_t = patches.reshape(K, N, S)
    x_t = jnp.pad(x_t, ((0, K_PAD - K), (0, 0), (0, S_PAD - S)))    # zero rows/pixels are inert
    x_t = x_t.reshape(K_PAD, N * S_PAD).astype(jnp.bfloat16)

    # conv weight -> (C_PAD, K_PAD) with (kh, kw, ci) column ordering matching the im2col
    w_t = jnp.transpose(conv_w, (0, 2, 3, 1)).reshape(C_out, K)
    w_t = jnp.pad(w_t, ((0, C_PAD - C_out), (0, K_PAD - K))).astype(jnp.bfloat16)

    # 3) tiling: TM pixels per grid step (multiple of 128 -> unmasked, lane-dense I/O)
    TM_MAX = 4096
    TM = _pick_tile(S_PAD, TM_MAX)
    if N == 1 and S_PAD // TM < 2:        # keep >=2 parallel grid steps (v7x has 2 TensorCores)
        TM = _pick_tile(S_PAD, max(LANE, S_PAD // 2))
    JB = S_PAD // TM

    x_spec = pl.BlockSpec((K_PAD, TM), lambda n, j: (0, n * JB + j))
    w_spec = pl.BlockSpec((C_PAD, K_PAD), lambda n, j: (0, 0),
                          pipeline_mode=pl.Buffered(1))     # constant block -> single buffer

    # explicit VMEM budget (logical bytes + generous headroom) so defaults never force tiny tiles
    est = (2 * _round_up(K_PAD, 16) * TM * 2          # double-buffered bf16 input tiles
           + C_PAD * _round_up(K_PAD, LANE) * 2       # weights (single buffer, lane-padded)
           + 4 * C_PAD * TM * 4                       # f32 matmul / BN intermediates headroom
           + 2 * max(C_out, 8) * TM * 4               # double-buffered output tiles
           + (2 << 20))
    vmem_limit = int(min(48 << 20, max(32 << 20, 2 * est)))
    cparams = pltpu.CompilerParams(
        dimension_semantics=("parallel", "parallel"),
        vmem_limit_bytes=vmem_limit)

    # ------ pass 1 (Pallas): conv -> per-tile channel sum / sum-of-squares only ------
    stats = pl.pallas_call(
        _conv_stats_kernel,
        out_shape=jax.ShapeDtypeStruct((N * JB, C_PAD, 2), jnp.float32),
        grid_spec=pltpu.PrefetchScalarGridSpec(
            num_scalar_prefetch=0,
            grid=(N, JB),
            in_specs=[x_spec, w_spec],
            out_specs=pl.BlockSpec((1, C_PAD, 2), lambda n, j: (n * JB + j, 0, 0)),
        ),
        compiler_params=cparams,
    )(x_t, w_t)

    # ------ BN finalize (tiny XLA): global stats, fold gamma[c]/beta[c] into per-sample a,b ---
    tot = jnp.sum(stats, axis=0)                            # (C_PAD, 2)
    mean = tot[:, 0] / M                                    # padded pixels contribute exactly 0
    var = jnp.maximum(tot[:, 1] / M - mean * mean, 0.0)     # biased var (BN training forward)
    # TODO(synk): E[x^2]-mean^2 in f32 can cancel for very large |mean|*sqrt(M); a Welford-style
    # merge of the per-tile stats would be more robust if parity requirements tighten.
    inv_std = lax.rsqrt(var + EPS)
    gamma_pad = jnp.pad(gamma_emb.astype(jnp.float32), ((0, 0), (0, C_PAD - C_out)))
    beta_pad = jnp.pad(beta_emb.astype(jnp.float32), ((0, 0), (0, C_PAD - C_out)))
    a_n = gamma_pad[c] * inv_std[None, :]                   # (N, C_PAD)
    b_n = beta_pad[c] - a_n * mean[None, :]
    a_nb = a_n[:, :, None]                                  # (N, C_PAD, 1)
    b_nb = b_n[:, :, None]

    # ------ pass 2 (Pallas): conv recompute + a*y+b + ReLU, unpadded lane-dense output ------
    out = pl.pallas_call(
        functools.partial(_conv_cbn_relu_kernel, c_out=C_out),
        out_shape=jax.ShapeDtypeStruct((N, C_out, S_PAD), jnp.float32),
        grid_spec=pltpu.PrefetchScalarGridSpec(
            num_scalar_prefetch=0,
            grid=(N, JB),
            in_specs=[
                x_spec,
                w_spec,
                pl.BlockSpec((1, C_PAD, 1), lambda n, j: (n, 0, 0)),
                pl.BlockSpec((1, C_PAD, 1), lambda n, j: (n, 0, 0)),
            ],
            out_specs=pl.BlockSpec((1, C_out, TM), lambda n, j: (n, 0, j)),
        ),
        compiler_params=cparams,
    )(x_t, w_t, a_nb, b_nb)

    # drop per-sample spatial padding (if any) and reshape to NCHW (free)
    if S_PAD != S:
        out = out[:, :, :S]
    return out.reshape(N, C_out, OH, OW)


# ---------------------------------------------------------------------------
# Pure-JAX reference (correctness check only)
# ---------------------------------------------------------------------------
def _reference(x, c, params, *, stride, padding):
    x = jnp.repeat(jnp.repeat(x, 2, axis=2), 2, axis=3)
    x = jnp.pad(x, ((0, 0), (0, 0), (padding, padding), (padding, padding)))
    y = lax.conv_general_dilated(
        x.astype(jnp.float32), params["conv_w"].astype(jnp.float32),
        window_strides=(stride, stride), padding="VALID",
        dimension_numbers=("NCHW", "OIHW", "NCHW"),
        precision=lax.Precision.HIGHEST,
    )
    y = y + params["conv_b"].astype(jnp.float32)[None, :, None, None]
    mean = jnp.mean(y, axis=(0, 2, 3), keepdims=True)
    var = jnp.mean((y - mean) ** 2, axis=(0, 2, 3), keepdims=True)
    x_hat = (y - mean) / jnp.sqrt(var + EPS)
    g = params["gamma_emb"][c].astype(jnp.float32)[:, :, None, None]
    b = params["beta_emb"][c].astype(jnp.float32)[:, :, None, None]
    return jnp.maximum(g * x_hat + b, 0.0)


if __name__ == "__main__":
    n_class, input_nc, output_nc = 10, 4, 8
    kernel_size, stride, padding = 3, 1, 1

    key = jax.random.PRNGKey(0)
    k1, k2, k3, k4, k5, k6 = jax.random.split(key, 6)
    params = {
        "conv_w": 0.1 * jax.random.normal(k1, (output_nc, input_nc, kernel_size, kernel_size), jnp.float32),
        "conv_b": 0.1 * jax.random.normal(k2, (output_nc,), jnp.float32),
        "gamma_emb": 1.0 + 0.1 * jax.random.normal(k3, (n_class, output_nc), jnp.float32),
        "beta_emb": 0.1 * jax.random.normal(k4, (n_class, output_nc), jnp.float32),
    }

    x = jax.random.normal(k5, (2, input_nc, 16, 16), jnp.float32)   # NCHW, like PyTorch
    c = jax.random.randint(k6, (2,), 0, n_class)

    fn = jax.jit(functools.partial(up_conv2d_block_cbn,
                                   kernel_size=kernel_size, stride=stride, padding=padding))
    out = jax.block_until_ready(fn(x, c, params))

    ref = _reference(x, c, params, stride=stride, padding=padding)
    assert out.shape == (2, output_nc, 32, 32), out.shape
    # tolerance sized for bf16 MXU inputs (f32 accumulation)
    assert jnp.allclose(out, ref, atol=3e-2, rtol=3e-2), float(jnp.max(jnp.abs(out - ref)))

    print("KERNEL_OK")
</pallas_src>

<mosaic_0001>
module attributes {stable_mosaic.version = 11 : i64} {
  func.func @_conv_stats_kernel(%arg0: i32, %arg1: i32, %arg2: memref<40x1024xbf16, #tpu.memory_space<vmem>>, %arg3: memref<128x40xbf16, #tpu.memory_space<vmem>>, %arg4: memref<1x128x2xf32, #tpu.memory_space<vmem>>) attributes {dimension_semantics = [#tpu.dimension_semantics<parallel>, #tpu.dimension_semantics<parallel>], iteration_bounds = array<i64: 2, 1>, scalar_prefetch = 0 : i64, scratch_operands = 0 : i64, tpu.core_type = #tpu.core_type<tc>, window_params = [{transform_indices = @transform_0, window_bounds = array<i64: 40, 1024>}, {pipeline_mode = #tpu.pipeline_mode<synchronous>, transform_indices = @transform_1, window_bounds = array<i64: 128, 40>}, {transform_indices = @transform_2, window_bounds = array<i64: 1, 128, 2>}]} {
    %c0 = arith.constant 0 : index
    %c0_0 = arith.constant 0 : index
    %0 = vector.load %arg3[%c0, %c0_0] : memref<128x40xbf16, #tpu.memory_space<vmem>>, vector<128x40xbf16>
    %c0_1 = arith.constant 0 : index
    %c0_2 = arith.constant 0 : index
    %1 = vector.load %arg2[%c0_1, %c0_2] : memref<40x1024xbf16, #tpu.memory_space<vmem>>, vector<40x1024xbf16>
    %cst = arith.constant dense<0.000000e+00> : vector<128x1024xf32>
    %2 = tpu.matmul %0, %1, %cst {dimension_numbers = #tpu.dot_dimension_numbers<[1], [0], [0], [1], [0, 0, 1, 1], [], []>} : vector<128x40xbf16>, vector<40x1024xbf16>, vector<128x1024xf32> -> vector<128x1024xf32>
    %cst_3 = arith.constant dense<0.000000e+00> : vector<128xf32>
    %3 = vector.multi_reduction <add>, %2, %cst_3 [1] : vector<128x1024xf32> to vector<128xf32>
    %4 = vector.shape_cast %3 : vector<128xf32> to vector<128x1xf32>
    %c0_4 = arith.constant 0 : index
    %c0_5 = arith.constant 0 : index
    %c0_6 = arith.constant 0 : index
    %5 = vector.load %arg4[%c0_4, %c0_5, %c0_6] : memref<1x128x2xf32, #tpu.memory_space<vmem>>, vector<1x128x1xf32>
    %6 = vector.shape_cast %5 : vector<1x128x1xf32> to vector<128x1xf32>
    %7 = vector.shape_cast %4 : vector<128x1xf32> to vector<1x128x1xf32>
    tpu.vector_store %arg4[%c0_4, %c0_5, %c0_6], %7 {strides = array<i32>} : memref<1x128x2xf32, #tpu.memory_space<vmem>>, vector<1x128x1xf32>,
    %8 = arith.mulf %2, %2 : vector<128x1024xf32>
    %cst_7 = arith.constant dense<0.000000e+00> : vector<128xf32>
    %9 = vector.multi_reduction <add>, %8, %cst_7 [1] : vector<128x1024xf32> to vector<128xf32>
    %10 = vector.shape_cast %9 : vector<128xf32> to vector<128x1xf32>
    %c0_8 = arith.constant 0 : index
    %c0_9 = arith.constant 0 : index
    %c1 = arith.constant 1 : index
    %11 = vector.load %arg4[%c0_8, %c0_9, %c1] : memref<1x128x2xf32, #tpu.memory_space<vmem>>, vector<1x128x1xf32>
    %12 = vector.shape_cast %11 : vector<1x128x1xf32> to vector<128x1xf32>
    %13 = vector.shape_cast %10 : vector<128x1xf32> to vector<1x128x1xf32>
    tpu.vector_store %arg4[%c0_8, %c0_9, %c1], %13 {strides = array<i32>} : memref<1x128x2xf32, #tpu.memory_space<vmem>>, vector<1x128x1xf32>,
    return
  }
  func.func @transform_0(%arg0: i32, %arg1: i32) -> (i32, i32) {
    %c1_i32 = arith.constant 1 : i32
    %0 = arith.muli %arg0, %c1_i32 : i32
    %1 = arith.addi %0, %arg1 : i32
    %c0_i32 = arith.constant 0 : i32
    %c0_i32_0 = arith.constant 0 : i32
    return %c0_i32, %1 : i32, i32
  }
  func.func @transform_1(%arg0: i32, %arg1: i32) -> (i32, i32) {
    %c0_i32 = arith.constant 0 : i32
    %c0_i32_0 = arith.constant 0 : i32
    %c0_i32_1 = arith.constant 0 : i32
    return %c0_i32, %c0_i32_0 : i32, i32
  }
  func.func @transform_2(%arg0: i32, %arg1: i32) -> (i32, i32, i32) {
    %c1_i32 = arith.constant 1 : i32
    %0 = arith.muli %arg0, %c1_i32 : i32
    %1 = arith.addi %0, %arg1 : i32
    %c0_i32 = arith.constant 0 : i32
    %c0_i32_0 = arith.constant 0 : i32
    %c0_i32_1 = arith.constant 0 : i32
    return %1, %c0_i32, %c0_i32_0 : i32, i32, i32
  }
}

module attributes {stable_mosaic.version = 11 : i64} {
  func.func @_conv_cbn_relu_kernel(%arg0: i32, %arg1: i32, %arg2: memref<40x1024xbf16, #tpu.memory_space<vmem>>, %arg3: memref<128x40xbf16, #tpu.memory_space<vmem>>, %arg4: memref<1x128x1xf32, #tpu.memory_space<vmem>>, %arg5: memref<1x128x1xf32, #tpu.memory_space<vmem>>, %arg6: memref<1x8x1024xf32, #tpu.memory_space<vmem>>) attributes {dimension_semantics = [#tpu.dimension_semantics<parallel>, #tpu.dimension_semantics<parallel>], iteration_bounds = array<i64: 2, 1>, scalar_prefetch = 0 : i64, scratch_operands = 0 : i64, tpu.core_type = #tpu.core_type<tc>, window_params = [{transform_indices = @transform_0, window_bounds = array<i64: 40, 1024>}, {pipeline_mode = #tpu.pipeline_mode<synchronous>, transform_indices = @transform_1, window_bounds = array<i64: 128, 40>}, {transform_indices = @transform_2, window_bounds = array<i64: 1, 128, 1>}, {transform_indices = @transform_3, window_bounds = array<i64: 1, 128, 1>}, {transform_indices = @transform_4, window_bounds = array<i64: 1, 8, 1024>}]} {
    %c0 = arith.constant 0 : index
    %c0_0 = arith.constant 0 : index
    %0 = vector.load %arg3[%c0, %c0_0] : memref<128x40xbf16, #tpu.memory_space<vmem>>, vector<128x40xbf16>
    %c0_1 = arith.constant 0 : index
    %c0_2 = arith.constant 0 : index
    %1 = vector.load %arg2[%c0_1, %c0_2] : memref<40x1024xbf16, #tpu.memory_space<vmem>>, vector<40x1024xbf16>
    %cst = arith.constant dense<0.000000e+00> : vector<128x1024xf32>
    %2 = tpu.matmul %0, %1, %cst {dimension_numbers = #tpu.dot_dimension_numbers<[1], [0], [0], [1], [0, 0, 1, 1], [], []>} : vector<128x40xbf16>, vector<40x1024xbf16>, vector<128x1024xf32> -> vector<128x1024xf32>
    %c0_3 = arith.constant 0 : index
    %c0_4 = arith.constant 0 : index
    %c0_5 = arith.constant 0 : index
    %3 = vector.load %arg4[%c0_3, %c0_4, %c0_5] : memref<1x128x1xf32, #tpu.memory_space<vmem>>, vector<1x128x1xf32>
    %4 = vector.shape_cast %3 : vector<1x128x1xf32> to vector<128x1xf32>
    %c0_6 = arith.constant 0 : index
    %c0_7 = arith.constant 0 : index
    %c0_8 = arith.constant 0 : index
    %5 = vector.load %arg5[%c0_6, %c0_7, %c0_8] : memref<1x128x1xf32, #tpu.memory_space<vmem>>, vector<1x128x1xf32>
    %6 = vector.shape_cast %5 : vector<1x128x1xf32> to vector<128x1xf32>
    %7 = vector.broadcast %4 : vector<128x1xf32> to vector<128x1024xf32>
    %8 = arith.mulf %2, %7 : vector<128x1024xf32>
    %9 = vector.broadcast %6 : vector<128x1xf32> to vector<128x1024xf32>
    %10 = arith.addf %8, %9 : vector<128x1024xf32>
    %cst_9 = arith.constant 0.000000e+00 : f32
    %11 = vector.broadcast %cst_9 : f32 to vector<128x1024xf32>
    %12 = arith.maximumf %10, %11 : vector<128x1024xf32>
    %13 = vector.extract_strided_slice %12 {offsets = [0, 0], sizes = [8, 1024], strides = [1, 1]} : vector<128x1024xf32> to vector<8x1024xf32>
    %c0_10 = arith.constant 0 : index
    %c0_11 = arith.constant 0 : index
    %c0_12 = arith.constant 0 : index
    %14 = vector.load %arg6[%c0_10, %c0_11, %c0_12] : memref<1x8x1024xf32, #tpu.memory_space<vmem>>, vector<1x8x1024xf32>
    %15 = vector.shape_cast %14 : vector<1x8x1024xf32> to vector<8x1024xf32>
    %16 = vector.shape_cast %13 : vector<8x1024xf32> to vector<1x8x1024xf32>
    tpu.vector_store %arg6[%c0_10, %c0_11, %c0_12], %16 {strides = array<i32>} : memref<1x8x1024xf32, #tpu.memory_space<vmem>>, vector<1x8x1024xf32>,
    return
  }
  func.func @transform_0(%arg0: i32, %arg1: i32) -> (i32, i32) {
    %c1_i32 = arith.constant 1 : i32
    %0 = arith.muli %arg0, %c1_i32 : i32
    %1 = arith.addi %0, %arg1 : i32
    %c0_i32 = arith.constant 0 : i32
    %c0_i32_0 = arith.constant 0 : i32
    return %c0_i32, %1 : i32, i32
  }
  func.func @transform_1(%arg0: i32, %arg1: i32) -> (i32, i32) {
    %c0_i32 = arith.constant 0 : i32
    %c0_i32_0 = arith.constant 0 : i32
    %c0_i32_1 = arith.constant 0 : i32
    return %c0_i32, %c0_i32_0 : i32, i32
  }
  func.func @transform_2(%arg0: i32, %arg1: i32) -> (i32, i32, i32) {
    %c0_i32 = arith.constant 0 : i32
    %c0_i32_0 = arith.constant 0 : i32
    %c0_i32_1 = arith.constant 0 : i32
    return %arg0, %c0_i32, %c0_i32_0 : i32, i32, i32
  }
  func.func @transform_3(%arg0: i32, %arg1: i32) -> (i32, i32, i32) {
    %c0_i32 = arith.constant 0 : i32
    %c0_i32_0 = arith.constant 0 : i32
    %c0_i32_1 = arith.constant 0 : i32
    return %arg0, %c0_i32, %c0_i32_0 : i32, i32, i32
  }
  func.func @transform_4(%arg0: i32, %arg1: i32) -> (i32, i32, i32) {
    %c0_i32 = arith.constant 0 : i32
    %c0_i32_0 = arith.constant 0 : i32
    return %arg0, %c0_i32, %arg1 : i32, i32, i32
  }
}

</mosaic_0001>

<llo_original>
// kernel: up_conv2d_block_cbn.2
$region0: #{up_conv2d_block_cbn.2}
  #allocation0 [shape = 'u32[]', space=smem, size = 0x4, offset = 0x4, fixed_abs, tag = 'smem constant byte address 0x4 - core index']
  #allocation1 [shape = 'u32[144,128]{1,0:T(1,128)}', space=vmem, size = 0x12000, scoped, tag = 'internal scratch']
  %s0 = inlined_call_operand.vmem [shape: bf16[40,2048], index: 0, kind: input, shape index: {}]
  %s1 = inlined_call_operand.vmem [shape: bf16[128,40], index: 1, kind: input, shape index: {}]
  %s2 = inlined_call_operand.vmem [shape: f32[2,128,2], index: 2, kind: output, shape index: {}]
  %s3 = sld [smem:[#allocation0]]
  $region64: #{up_conv2d_block_cbn.2} parent=0
    _
  %s5 = ssub.s32 1, %s3
  %s6 = scalar_select 0, %s5, %s3
  $region1: #{up_conv2d_block_cbn.2} parent=0
    #allocation2 [shape = 'u8[163840]{0}', space=vmem, size = 0x28000, scoped, tag = 'input window, operand 0']
    loop: start=0, step=1, limit=4
    $region2: #{up_conv2d_block_cbn.2} parent=1 // loop_pre_header
      _
    $region3: #{up_conv2d_block_cbn.2} parent=1 // loop_header
      %s8 = sphi 0, %s12
      %p9 = scmp.ge.s32.totalorder %s8, 4
      %s15 = sphi 0, %s27
      %s16 = sphi 0, %s23
      %s17 = sphi 0, %s15
      %s18 = sphi 0, %s16
      %s19 = sphi 0, %s17
      %s20 = sphi 0, %s18
      %s32 = sphi 0, %s34
      %s35 = sphi 0, %s32
      %s36 = sphi 0, %s35
      %s52 = sphi 0, %s36
      %s56 = sphi 0, %s56
      %s58 = sphi 0, %s56
      %s59 = sphi 0, %s58
      %s73 = sphi 0, %s59
      %s81 = sphi 0, %s83
      %s84 = sphi 0, %s81
      %s85 = sphi 0, %s84
      %s101 = sphi 0, %s85
    $region4: #{up_conv2d_block_cbn.2} parent=1 // loop_header_branch
      %11 = sbr.rel (%p9) target = $region8
    $region5: #{up_conv2d_block_cbn.2} parent=1 // loop_body
      %s13 = ssub.s32 %s8, 1
      %s14 = ssub.s32 %s8, 2
      %s21 = sadd.s32 1, %s16
      %p22 = scmp.ge.s32.totalorder %s21, 1
      %s23 = scalar_select %p22, 0, %s21
      %s24 = sadd.s32 1, %s15
      %s25 = scalar_select %p22, %s24, %s15
      %p26 = scmp.ge.s32.totalorder %s25, 2
      %s27 = scalar_select %p26, 0, %s25
      %s28 = sadd.s32 %s15, %s16
      %s29 = sadd.s32 %s27, %s23
      %s30 = ssub.s32 %s28, %s29
      %p31 = scmp.eq.s32.totalorder %s30, 0
      %s33 = sadd.s32 %s32, 1
      %s34 = scalar_select %p31, %s32, %s33
      %p37 = pneg %p31
      %p38 = scmp.eq.s32.totalorder %s8, 1
      %p39 = por %p37, %p38
      %p40 = scmp.ne.s32.totalorder %s32, %s35
      %p41 = scmp.eq.s32.totalorder %s8, 0
      %p42 = por %p40, %p41
      %p43 = scmp.ne.s32.totalorder %s32, %s35
      %p44 = scmp.eq.s32.totalorder %s13, 1
      %p45 = por %p43, %p44
      %p46 = scmp.ne.s32.totalorder %s35, %s36
      %p47 = scmp.eq.s32.totalorder %s13, 0
      %p48 = por %p46, %p47
      %p49 = scmp.ne.s32.totalorder %s35, %s36
      %p50 = scmp.eq.s32.totalorder %s14, 1
      %p51 = por %p49, %p50
      %p53 = scmp.ne.s32.totalorder %s36, %s52
      %p54 = scmp.eq.s32.totalorder %s14, 0
      %p55 = por %p53, %p54
      %s57 = sadd.s32 %s56, 1
      %p60 = scmp.eq.s32.totalorder %s8, 1
      %p61 = scmp.ne.s32.totalorder %s56, %s58
      %p62 = scmp.eq.s32.totalorder %s8, 0
      %p63 = por %p61, %p62
      %p64 = scmp.ne.s32.totalorder %s56, %s58
      %p65 = scmp.eq.s32.totalorder %s13, 1
      %p66 = por %p64, %p65
      %p67 = scmp.ne.s32.totalorder %s58, %s59
      %p68 = scmp.eq.s32.totalorder %s13, 0
      %p69 = por %p67, %p68
      %p70 = scmp.ne.s32.totalorder %s58, %s59
      %p71 = scmp.eq.s32.totalorder %s14, 1
      %p72 = por %p70, %p71
      %p74 = scmp.ne.s32.totalorder %s59, %s73
      %p75 = scmp.eq.s32.totalorder %s14, 0
      %p76 = por %p74, %p75
      %s77 = sadd.s32 %s15, %s16
      %s78 = sadd.s32 %s27, %s23
      %s79 = ssub.s32 %s77, %s78
      %p80 = scmp.eq.s32.totalorder %s79, 0
      %s82 = sadd.s32 %s81, 1
      %s83 = scalar_select %p80, %s81, %s82
      %p86 = pneg %p80
      %p87 = scmp.eq.s32.totalorder %s8, 1
      %p88 = por %p86, %p87
      %p89 = scmp.ne.s32.totalorder %s81, %s84
      %p90 = scmp.eq.s32.totalorder %s8, 0
      %p91 = por %p89, %p90
      %p92 = scmp.ne.s32.totalorder %s81, %s84
      %p93 = scmp.eq.s32.totalorder %s13, 1
      %p94 = por %p92, %p93
      %p95 = scmp.ne.s32.totalorder %s84, %s85
      %p96 = scmp.eq.s32.totalorder %s13, 0
      %p97 = por %p95, %p96
      %p98 = scmp.ne.s32.totalorder %s84, %s85
      %p99 = scmp.eq.s32.totalorder %s14, 1
      %p100 = por %p98, %p99
      %p102 = scmp.ne.s32.totalorder %s85, %s101
      %p103 = scmp.eq.s32.totalorder %s14, 0
      %p104 = por %p102, %p103
      %p105 = scmp.le.s32.totalorder 1, %s8
      %p106 = scmp.lt.s32.totalorder %s8, 3
      %p107 = pnand %p105, %p106
      %p108 = pneg %p107
      // Predicated region
      $region9: #{up_conv2d_block_cbn.2} parent=5 // pred_check
        _
      $region10: #{up_conv2d_block_cbn.2} parent=5 // pred_check_branch
        %110 = sbr.rel (%p107) target = $region12
      $region11: #{up_conv2d_block_cbn.2} parent=5 // pred_region
        %s111 = ssub.s32 %s8, 1
        // Predicated region
        $region13: #{up_conv2d_block_cbn.2} parent=11 // pred_check
          %p112 = pneg %p69
        $region14: #{up_conv2d_block_cbn.2} parent=11 // pred_check_branch
          %114 = sbr.rel (%p112) target = $region16
        $region15: #{up_conv2d_block_cbn.2} parent=11 // pred_region
          _
        $region16: #{up_conv2d_block_cbn.2} parent=11 // pred_fallthru
          _
      $region12: #{up_conv2d_block_cbn.2} parent=5 // pred_fallthru
        _
      %p115 = scmp.lt.s32.totalorder %s8, 2
      // Predicated region
      $region17: #{up_conv2d_block_cbn.2} parent=5 // pred_check
        %p116 = pneg %p115
      $region18: #{up_conv2d_block_cbn.2} parent=5 // pred_check_branch
        %118 = sbr.rel (%p116) target = $region20
      $region19: #{up_conv2d_block_cbn.2} parent=5 // pred_region
        // Predicated region
        $region21: #{up_conv2d_block_cbn.2} parent=19 // pred_check
          %p119 = pneg %p42
        $region22: #{up_conv2d_block_cbn.2} parent=19 // pred_check_branch
          %121 = sbr.rel (%p119) target = $region24
        $region23: #{up_conv2d_block_cbn.2} parent=19 // pred_region
          %s122 = sand.u32 %s32, 1
          %s123 = sand.u32 %s32, 1
          %s124 = smul.addr %s123, 160
          %s125 = scalar_lea.vmem [#allocation2], %s124
          %s126 = sadd.s32 %s15, %s16
          %s127 = smul.u32 8, %s126
          %s128 = smul.addr %s127, 4
          %s129 = scalar_lea.vmem %s0, %s128
          // Predicated region
          $region25: #{up_conv2d_block_cbn.2} parent=23 // pred_check
            _
          $region26: #{up_conv2d_block_cbn.2} parent=23 // pred_check_branch
            %131 = sbr.rel (0) target = $region28
          $region27: #{up_conv2d_block_cbn.2} parent=23 // pred_region
            // Predicated region
            $region29: #{up_conv2d_block_cbn.2} parent=27 // pred_check
              _
            $region30: #{up_conv2d_block_cbn.2} parent=27 // pred_check_branch
              %133 = sbr.rel (0) target = $region32
            $region31: #{up_conv2d_block_cbn.2} parent=27 // pred_region
              loop: start=0, step=1, limit=1
              $region33: #{up_conv2d_block_cbn.2} parent=31 // loop_pre_header
                _
              $region34: #{up_conv2d_block_cbn.2} parent=31 // loop_header
                %s135 = sphi 0, %s139
                %p136 = scmp.ge.s32.totalorder %s135, 1
                %s140 = sphi %s129, %s129
                %s141 = sphi %s125, %s125
              $region35: #{up_conv2d_block_cbn.2} parent=31 // loop_header_branch
                %138 = sbr.rel (%p136) target = $region39
              $region36: #{up_conv2d_block_cbn.2} parent=31 // loop_body
                %v142 = vld [vmem:[%s140] sm:$0xff]
                %143 = vst [vmem:[%s141] sm:$0xff] %v142
                %v144 = vld [vmem:[%s140 + $0x8] sm:$0xff]
                %145 = vst [vmem:[%s141 + $0x8] sm:$0xff] %v144
                %v146 = vld [vmem:[%s140 + $0x10] sm:$0xff]
                %147 = vst [vmem:[%s141 + $0x10] sm:$0xff] %v146
                %v148 = vld [vmem:[%s140 + $0x18] sm:$0xff]
                %149 = vst [vmem:[%s141 + $0x18] sm:$0xff] %v148
                %v150 = vld [vmem:[%s140 + $0x40] sm:$0xff]
                %151 = vst [vmem:[%s141 + $0x20] sm:$0xff] %v150
                %v152 = vld [vmem:[%s140 + $0x48] sm:$0xff]
                %153 = vst [vmem:[%s141 + $0x28] sm:$0xff] %v152
                %v154 = vld [vmem:[%s140 + $0x50] sm:$0xff]
                %155 = vst [vmem:[%s141 + $0x30] sm:$0xff] %v154
                %v156 = vld [vmem:[%s140 + $0x58] sm:$0xff]
                %157 = vst [vmem:[%s141 + $0x38] sm:$0xff] %v156
                %v158 = vld [vmem:[%s140 + $0x80] sm:$0xff]
                %159 = vst [vmem:[%s141 + $0x40] sm:$0xff] %v158
                %v160 = vld [vmem:[%s140 + $0x88] sm:$0xff]
                %161 = vst [vmem:[%s141 + $0x48] sm:$0xff] %v160
                %v162 = vld [vmem:[%s140 + $0x90] sm:$0xff]
                %163 = vst [vmem:[%s141 + $0x50] sm:$0xff] %v162
                %v164 = vld [vmem:[%s140 + $0x98] sm:$0xff]
                %165 = vst [vmem:[%s141 + $0x58] sm:$0xff] %v164
                %v166 = vld [vmem:[%s140 + $0xc0] sm:$0xff]
                %167 = vst [vmem:[%s141 + $0x60] sm:$0xff] %v166
                %v168 = vld [vmem:[%s140 + $0xc8] sm:$0xff]
                %169 = vst [vmem:[%s141 + $0x68] sm:$0xff] %v168
                %v170 = vld [vmem:[%s140 + $0xd0] sm:$0xff]
                %171 = vst [vmem:[%s141 + $0x70] sm:$0xff] %v170
                %v172 = vld [vmem:[%s140 + $0xd8] sm:$0xff]
                %173 = vst [vmem:[%s141 + $0x78] sm:$0xff] %v172
                %v174 = vld [vmem:[%s140 + $0x100] sm:$0xff]
                %175 = vst [vmem:[%s141 + $0x80] sm:$0xff] %v174
                %v176 = vld [vmem:[%s140 + $0x108] sm:$0xff]
                %177 = vst [vmem:[%s141 + $0x88] sm:$0xff] %v176
                %v178 = vld [vmem:[%s140 + $0x110] sm:$0xff]
                %179 = vst [vmem:[%s141 + $0x90] sm:$0xff] %v178
                %v180 = vld [vmem:[%s140 + $0x118] sm:$0xff]
                %181 = vst [vmem:[%s141 + $0x98] sm:$0xff] %v180
              $region37: #{up_conv2d_block_cbn.2} parent=31 // loop_footer
                %s139 = sadd.s32 1, %s135
              $region38: #{up_conv2d_block_cbn.2} parent=31 // loop_footer_branch
                %134 = sbr.rel target = $region34
              $region39: #{up_conv2d_block_cbn.2} parent=31 // loop_exit
                _
            $region32: #{up_conv2d_block_cbn.2} parent=27 // pred_fallthru
              _
            // Predicated region
            $region40: #{up_conv2d_block_cbn.2} parent=27 // pred_check
              _
            $region41: #{up_conv2d_block_cbn.2} parent=27 // pred_check_branch
              %183 = sbr.rel target = $region43
            $region42: #{up_conv2d_block_cbn.2} parent=27 // pred_region
              _
            $region43: #{up_conv2d_block_cbn.2} parent=27 // pred_fallthru
              _
          $region28: #{up_conv2d_block_cbn.2} parent=23 // pred_fallthru
            _
          %184 = vnop
        $region24: #{up_conv2d_block_cbn.2} parent=19 // pred_fallthru
          _
      $region20: #{up_conv2d_block_cbn.2} parent=5 // pred_fallthru
        _
      %p185 = scmp.le.s32.totalorder 1, %s8
      %p186 = scmp.lt.s32.totalorder %s8, 3
      %p187 = pnand %p185, %p186
      %p188 = pneg %p187
      // Predicated region
      $region44: #{up_conv2d_block_cbn.2} parent=5 // pred_check
        _
      $region45: #{up_conv2d_block_cbn.2} parent=5 // pred_check_branch
        %190 = sbr.rel (%p187) target = $region47
      $region46: #{up_conv2d_block_cbn.2} parent=5 // pred_region
        %s191 = ssub.s32 %s8, 1
        %s192 = sand.u32 %s35, 1
        %s193 = sand.u32 %s35, 1
        %s194 = smul.addr %s193, 160
        %s195 = scalar_lea.vmem [#allocation2], %s194
        // Predicated region
        $region48: #{up_conv2d_block_cbn.2} parent=46 // pred_check
          %p196 = pneg %p48
        $region49: #{up_conv2d_block_cbn.2} parent=46 // pred_check_branch
          %198 = sbr.rel (%p196) target = $region51
        $region50: #{up_conv2d_block_cbn.2} parent=46 // pred_region
          _
        $region51: #{up_conv2d_block_cbn.2} parent=46 // pred_fallthru
          _
        %s199 = sand.u32 %s35, 1
        %s200 = sand.u32 %s35, 1
        %s201 = smul.addr %s200, 160
        %s202 = scalar_lea.vmem [#allocation2], %s201
        %p203 = pneg %p48
        %p204 = pneg %p45
        %p205 = pneg %p69
        %p206 = pneg %p66
        %p207 = pneg %p97
        %p208 = pneg %p94
        %s209 = sadd.s32 %s17, %s18
        %p210 = scmp.lt.s32.totalorder %s209, 1
        %s211 = scalar_select %p210, %s209, 1
        %s212 = smul.addr %s211, 16
        %s213 = smul.addr %s212, 8
        %s214 = scalar_lea.vmem %s2, %s213
        %s215 = sadd.s32 %s17, %s18
        %s216 = smul.u32 8, %s215
        %s217 = sadd.s32 %s17, %s18
        %p218 = scmp.lt.s32.totalorder %s217, 1
        %s219 = scalar_select %p218, %s217, 1
        %s220 = smul.addr %s219, 16
        %s221 = smul.addr %s220, 8
        %s222 = scalar_lea.vmem %s2, %s221
        %s223 = sadd.s32 %s17, %s18
        %v225 = vld [vmem:[%s1] sm:$0xf]
        %v226 = vld [vmem:[%s1 + $0x4] sm:$0xf]
        %v227 = vld [vmem:[%s1 + $0x8] sm:$0xf]
        %v228 = vld [vmem:[%s1 + $0xc] sm:$0xf]
        %v229 = vld [vmem:[%s1 + $0x10] sm:$0xf]
        %v230 = vld [vmem:[%s1 + $0x14] sm:$0xf]
        %v231 = vld [vmem:[%s1 + $0x18] sm:$0xf]
        %v232 = vld [vmem:[%s1 + $0x1c] sm:$0xf]
        %v233 = vld [vmem:[%s1 + $0x20] sm:$0xf]
        %v234 = vld [vmem:[%s1 + $0x24] sm:$0xf]
        %v235 = vld [vmem:[%s1 + $0x28] sm:$0xf]
        %v236 = vld [vmem:[%s1 + $0x2c] sm:$0xf]
        %v237 = vld [vmem:[%s1 + $0x30] sm:$0xf]
        %v238 = vld [vmem:[%s1 + $0x34] sm:$0xf]
        %v239 = vld [vmem:[%s1 + $0x38] sm:$0xf]
        %v240 = vld [vmem:[%s1 + $0x3c] sm:$0xf]
        %v241 = vld [vmem:[%s195] sm:$0xff]
        %v242 = vld [vmem:[%s195 + $0x8] sm:$0xff]
        %v243 = vld [vmem:[%s195 + $0x10] sm:$0xff]
        %v244 = vld [vmem:[%s195 + $0x18] sm:$0xff]
        %v245 = vld [vmem:[%s195 + $0x20] sm:$0xff]
        %v246 = vld [vmem:[%s195 + $0x28] sm:$0xff]
        %v247 = vld [vmem:[%s195 + $0x30] sm:$0xff]
        %v248 = vld [vmem:[%s195 + $0x38] sm:$0xff]
        %v249 = vld [vmem:[%s195 + $0x40] sm:$0xff]
        %v250 = vld [vmem:[%s195 + $0x48] sm:$0xff]
        %v251 = vld [vmem:[%s195 + $0x50] sm:$0xff]
        %v252 = vld [vmem:[%s195 + $0x58] sm:$0xff]
        %v253 = vld [vmem:[%s195 + $0x60] sm:$0xff]
        %v254 = vld [vmem:[%s195 + $0x68] sm:$0xff]
        %v255 = vld [vmem:[%s195 + $0x70] sm:$0xff]
        %v256 = vld [vmem:[%s195 + $0x78] sm:$0xff]
        %v257 = vld [vmem:[%s195 + $0x80] sm:$0xff]
        %v258 = vld [vmem:[%s195 + $0x88] sm:$0xff]
        %v259 = vld [vmem:[%s195 + $0x90] sm:$0xff]
        %v260 = vld [vmem:[%s195 + $0x98] sm:$0xff]
        %v277 = vunpack.c.l.b16 %v225
        %v278 = vunpack.c.l.b16 %v226
        %v279 = vunpack.c.l.b16 %v227
        %v280 = vunpack.c.l.b16 %v228
        %v281 = vunpack.c.l.b16 %v229
        %v282 = vunpack.c.l.b16 %v230
        %v283 = vunpack.c.l.b16 %v231
        %v284 = vunpack.c.l.b16 %v232
        %v285 = vunpack.c.l.b16 %v233
        %v286 = vunpack.c.l.b16 %v234
        %v287 = vunpack.c.l.b16 %v235
        %v288 = vunpack.c.l.b16 %v236
        %v289 = vunpack.c.l.b16 %v237
        %v290 = vunpack.c.l.b16 %v238
        %v291 = vunpack.c.l.b16 %v239
        %v292 = vunpack.c.l.b16 %v240
        %v293 = vpack.c.b16 %v278, %v277
        %v294 = vpack.c.b16 %v280, %v279
        %v295 = vpack.c.b16 %v282, %v281
        %v296 = vpack.c.b16 %v284, %v283
        %v297 = vpack.c.b16 %v286, %v285
        %v298 = vpack.c.b16 %v288, %v287
        %v299 = vpack.c.b16 %v290, %v289
        %v300 = vpack.c.b16 %v292, %v291
        %v321 = vunpack.c.l.b16 %v241
        %v322 = vunpack.c.h.b16 %v241
        %v323 = vunpack.c.l.b16 %v242
        %v324 = vunpack.c.h.b16 %v242
        %v325 = vunpack.c.l.b16 %v243
        %v326 = vunpack.c.h.b16 %v243
        %v327 = vunpack.c.l.b16 %v244
        %v328 = vunpack.c.h.b16 %v244
        %v329 = vunpack.c.l.b16 %v245
        %v330 = vunpack.c.h.b16 %v245
        %v331 = vunpack.c.l.b16 %v246
        %v332 = vunpack.c.h.b16 %v246
        %v333 = vunpack.c.l.b16 %v247
        %v334 = vunpack.c.h.b16 %v247
        %v335 = vunpack.c.l.b16 %v248
        %v336 = vunpack.c.h.b16 %v248
        %v337 = vunpack.c.l.b16 %v249
        %v338 = vunpack.c.h.b16 %v249
        %v339 = vunpack.c.l.b16 %v250
        %v340 = vunpack.c.h.b16 %v250
        %v341 = vunpack.c.l.b16 %v251
        %v342 = vunpack.c.h.b16 %v251
        %v343 = vunpack.c.l.b16 %v252
        %v344 = vunpack.c.h.b16 %v252
        %v345 = vunpack.c.l.b16 %v253
        %v346 = vunpack.c.h.b16 %v253
        %v347 = vunpack.c.l.b16 %v254
        %v348 = vunpack.c.h.b16 %v254
        %v349 = vunpack.c.l.b16 %v255
        %v350 = vunpack.c.h.b16 %v255
        %v351 = vunpack.c.l.b16 %v256
        %v352 = vunpack.c.h.b16 %v256
        %v353 = vunpack.c.l.b16 %v257
        %v354 = vunpack.c.h.b16 %v257
        %v355 = vunpack.c.l.b16 %v258
        %v356 = vunpack.c.h.b16 %v258
        %v357 = vunpack.c.l.b16 %v259
        %v358 = vunpack.c.h.b16 %v259
        %v359 = vunpack.c.l.b16 %v260
        %v360 = vunpack.c.h.b16 %v260
        %v361 = vpack.c.b16 %v329, %v321
        %v362 = vpack.c.b16 %v330, %v322
        %v363 = vpack.c.b16 %v331, %v323
        %v364 = vpack.c.b16 %v332, %v324
        %v365 = vpack.c.b16 %v333, %v325
        %v366 = vpack.c.b16 %v334, %v326
        %v367 = vpack.c.b16 %v335, %v327
        %v368 = vpack.c.b16 %v336, %v328
        %v369 = vpack.c.b16 %v345, %v337
        %v370 = vpack.c.b16 %v346, %v338
        %v371 = vpack.c.b16 %v347, %v339
        %v372 = vpack.c.b16 %v348, %v340
        %v373 = vpack.c.b16 %v349, %v341
        %v374 = vpack.c.b16 %v350, %v342
        %v375 = vpack.c.b16 %v351, %v343
        %v376 = vpack.c.b16 %v352, %v344
        %v377 = vpack.c.b16 %v353, %v353
        %v378 = vpack.c.b16 %v354, %v354
        %v379 = vpack.c.b16 %v355, %v355
        %v380 = vpack.c.b16 %v356, %v356
        %v381 = vpack.c.b16 %v357, %v357
        %v382 = vpack.c.b16 %v358, %v358
        %v383 = vpack.c.b16 %v359, %v359
        %v384 = vpack.c.b16 %v360, %v360
        %vm401 = vcmask 326656
        %v403 = vsel %vm401, %v293, 0
        %v406 = vsel %vm401, %v294, 0
        %v409 = vsel %vm401, %v295, 0
        %v412 = vsel %vm401, %v296, 0
        %v415 = vsel %vm401, %v297, 0
        %v418 = vsel %vm401, %v298, 0
        %v421 = vsel %vm401, %v299, 0
        %v424 = vsel %vm401, %v300, 0
        %vm426 = vcmask 1043456
        %v428 = vsel %vm426, %v377, 0
        %v431 = vsel %vm426, %v378, 0
        %v434 = vsel %vm426, %v379, 0
        %v437 = vsel %vm426, %v380, 0
        %v440 = vsel %vm426, %v381, 0
        %v443 = vsel %vm426, %v382, 0
        %v446 = vsel %vm426, %v383, 0
        %v449 = vsel %vm426, %v384, 0
        %451 = vmatprep.subr.bf16.mxu0 0
        %452 = vmatpush1.bf16.msra.mxu0 0
        %453 = vmatprep.subr.bf16.mxu0 0
        %454 = vmatpush1.bf16.msra.mxu0 0
        %455 = vmatprep.subr.bf16.mxu0 0
        %456 = vmatpush1.bf16.msra.mxu0 0
        %457 = vmatprep.subr.bf16.mxu0 0
        %458 = vmatpush1.bf16.msra.mxu0 0
        %459 = vmatprep.subr.bf16.mxu0 0
        %460 = vmatpush1.bf16.msra.mxu0 0
        %461 = vmatprep.subr.bf16.mxu0 %v431
        %462 = vmatpush1.bf16.msra.mxu0 %v428
        %463 = vmatprep.subr.bf16.mxu0 %v370
        %464 = vmatpush1.bf16.msra.mxu0 %v369
        %465 = vmatprep.subr.bf16.mxu0 %v362
        %466 = vmatpush1.bf16.msra.mxu0 %v361
        %467 = vmatprep.subr.bf16.mxu0 0
        %468 = vmatpush2.bf16.msra.mxu0 0
        %469 = vmatprep.subr.bf16.mxu0 0
        %470 = vmatpush2.bf16.msra.mxu0 0
        %471 = vmatprep.subr.bf16.mxu0 0
        %472 = vmatpush2.bf16.msra.mxu0 0
        %473 = vmatprep.subr.bf16.mxu0 0
        %474 = vmatpush2.bf16.msra.mxu0 0
        %475 = vmatprep.subr.bf16.mxu0 0
        %476 = vmatpush2.bf16.msra.mxu0 0
        %477 = vmatprep.subr.bf16.mxu0 0
        %478 = vmatpush2.bf16.msra.mxu0 0
        %479 = vmatprep.subr.bf16.mxu0 0
        %480 = vmatpush2.bf16.msra.mxu0 0
        %481 = vmatprep.subr.bf16.mxu0 0
        %482 = vmatpush2.bf16.msra.mxu0 0
        %483 = vmatprep.mubr.bf16.mxu0 0
        %484 = vmatmul.mubr.bf16.gmra.mxu0 %v403
        %v485 = vpop.f32.mrf.mxu0
        %v486 = vadd.f32 0.0, %v485
        %v487 = vpop.f32.mrf.mxu0
        %v488 = vadd.f32 0.0, %v487
        %v489 = vpop.f32.mrf.mxu0
        %v490 = vadd.f32 0.0, %v489
        %v491 = vpop.f32.mrf.mxu0
        %v492 = vadd.f32 0.0, %v491
        %493 = vmatprep.mubr.bf16.mxu0 0
        %494 = vmatmul.mubr.bf16.gmra.mxu0 %v406
        %v495 = vpop.f32.mrf.mxu0
        %v496 = vadd.f32 0.0, %v495
        %v497 = vpop.f32.mrf.mxu0
        %v498 = vadd.f32 0.0, %v497
        %v499 = vpop.f32.mrf.mxu0
        %v500 = vadd.f32 0.0, %v499
        %v501 = vpop.f32.mrf.mxu0
        %v502 = vadd.f32 0.0, %v501
        %503 = vmatprep.mubr.bf16.mxu0 0
        %504 = vmatmul.mubr.bf16.gmra.mxu0 %v409
        %v505 = vpop.f32.mrf.mxu0
        %v506 = vadd.f32 0.0, %v505
        %v507 = vpop.f32.mrf.mxu0
        %v508 = vadd.f32 0.0, %v507
        %v509 = vpop.f32.mrf.mxu0
        %v510 = vadd.f32 0.0, %v509
        %v511 = vpop.f32.mrf.mxu0
        %v512 = vadd.f32 0.0, %v511
        %513 = vmatprep.mubr.bf16.mxu0 0
        %514 = vmatmul.mubr.bf16.gmra.mxu0 %v412
        %v515 = vpop.f32.mrf.mxu0
        %v516 = vadd.f32 0.0, %v515
        %v517 = vpop.f32.mrf.mxu0
        %v518 = vadd.f32 0.0, %v517
        %v519 = vpop.f32.mrf.mxu0
        %v520 = vadd.f32 0.0, %v519
        %v521 = vpop.f32.mrf.mxu0
        %v522 = vadd.f32 0.0, %v521
        %523 = vmatprep.mubr.bf16.mxu0 0
        %524 = vmatmul.mubr.bf16.gmra.mxu0 %v415
        %v525 = vpop.f32.mrf.mxu0
        %v526 = vadd.f32 0.0, %v525
        %v527 = vpop.f32.mrf.mxu0
        %v528 = vadd.f32 0.0, %v527
        %v529 = vpop.f32.mrf.mxu0
        %v530 = vadd.f32 0.0, %v529
        %v531 = vpop.f32.mrf.mxu0
        %v532 = vadd.f32 0.0, %v531
        %533 = vmatprep.mubr.bf16.mxu0 0
        %534 = vmatmul.mubr.bf16.gmra.mxu0 %v418
        %v535 = vpop.f32.mrf.mxu0
        %v536 = vadd.f32 0.0, %v535
        %v537 = vpop.f32.mrf.mxu0
        %v538 = vadd.f32 0.0, %v537
        %v539 = vpop.f32.mrf.mxu0
        %v540 = vadd.f32 0.0, %v539
        %v541 = vpop.f32.mrf.mxu0
        %v542 = vadd.f32 0.0, %v541
        %543 = vmatprep.mubr.bf16.mxu0 0
        %544 = vmatmul.mubr.bf16.gmra.mxu0 %v421
        %v545 = vpop.f32.mrf.mxu0
        %v546 = vadd.f32 0.0, %v545
        %v547 = vpop.f32.mrf.mxu0
        %v548 = vadd.f32 0.0, %v547
        %v549 = vpop.f32.mrf.mxu0
        %v550 = vadd.f32 0.0, %v549
        %v551 = vpop.f32.mrf.mxu0
        %v552 = vadd.f32 0.0, %v551
        %553 = vmatprep.mubr.bf16.mxu0 0
        %554 = vmatmul.mubr.bf16.gmra.mxu0 %v424
        %v555 = vpop.f32.mrf.mxu0
        %v556 = vadd.f32 0.0, %v555
        %v557 = vpop.f32.mrf.mxu0
        %v558 = vadd.f32 0.0, %v557
        %v559 = vpop.f32.mrf.mxu0
        %v560 = vadd.f32 0.0, %v559
        %v561 = vpop.f32.mrf.mxu0
        %v562 = vadd.f32 0.0, %v561
        %563 = vdwg.mxu0
        %564 = vmatprep.subr.bf16.mxu0 0
        %565 = vmatpush1.bf16.msra.mxu0 0
        %566 = vmatprep.subr.bf16.mxu0 0
        %567 = vmatpush1.bf16.msra.mxu0 0
        %568 = vmatprep.subr.bf16.mxu0 0
        %569 = vmatpush1.bf16.msra.mxu0 0
        %570 = vmatprep.subr.bf16.mxu0 0
        %571 = vmatpush1.bf16.msra.mxu0 0
        %572 = vmatprep.subr.bf16.mxu0 0
        %573 = vmatpush1.bf16.msra.mxu0 0
        %574 = vmatprep.subr.bf16.mxu0 %v437
        %575 = vmatpush1.bf16.msra.mxu0 %v434
        %576 = vmatprep.subr.bf16.mxu0 %v372
        %577 = vmatpush1.bf16.msra.mxu0 %v371
        %578 = vmatprep.subr.bf16.mxu0 %v364
        %579 = vmatpush1.bf16.msra.mxu0 %v363
        %580 = vmatprep.subr.bf16.mxu0 0
        %581 = vmatpush2.bf16.msra.mxu0 0
        %582 = vmatprep.subr.bf16.mxu0 0
        %583 = vmatpush2.bf16.msra.mxu0 0
        %584 = vmatprep.subr.bf16.mxu0 0
        %585 = vmatpush2.bf16.msra.mxu0 0
        %586 = vmatprep.subr.bf16.mxu0 0
        %587 = vmatpush2.bf16.msra.mxu0 0
        %588 = vmatprep.subr.bf16.mxu0 0
        %589 = vmatpush2.bf16.msra.mxu0 0
        %590 = vmatprep.subr.bf16.mxu0 0
        %591 = vmatpush2.bf16.msra.mxu0 0
        %592 = vmatprep.subr.bf16.mxu0 0
        %593 = vmatpush2.bf16.msra.mxu0 0
        %594 = vmatprep.subr.bf16.mxu0 0
        %595 = vmatpush2.bf16.msra.mxu0 0
        %596 = vmatprep.mubr.bf16.mxu0 0
        %597 = vmatmul.mubr.bf16.gmra.mxu0 %v403
        %v598 = vpop.f32.mrf.mxu0
        %v599 = vadd.f32 0.0, %v598
        %v600 = vpop.f32.mrf.mxu0
        %v601 = vadd.f32 0.0, %v600
        %v602 = vpop.f32.mrf.mxu0
        %v603 = vadd.f32 0.0, %v602
        %v604 = vpop.f32.mrf.mxu0
        %v605 = vadd.f32 0.0, %v604
        %606 = vmatprep.mubr.bf16.mxu0 0
        %607 = vmatmul.mubr.bf16.gmra.mxu0 %v406
        %v608 = vpop.f32.mrf.mxu0
        %v609 = vadd.f32 0.0, %v608
        %v610 = vpop.f32.mrf.mxu0
        %v611 = vadd.f32 0.0, %v610
        %v612 = vpop.f32.mrf.mxu0
        %v613 = vadd.f32 0.0, %v612
        %v614 = vpop.f32.mrf.mxu0
        %v615 = vadd.f32 0.0, %v614
        %616 = vmatprep.mubr.bf16.mxu0 0
        %617 = vmatmul.mubr.bf16.gmra.mxu0 %v409
        %v618 = vpop.f32.mrf.mxu0
        %v619 = vadd.f32 0.0, %v618
        %v620 = vpop.f32.mrf.mxu0
        %v621 = vadd.f32 0.0, %v620
        %v622 = vpop.f32.mrf.mxu0
        %v623 = vadd.f32 0.0, %v622
        %v624 = vpop.f32.mrf.mxu0
        %v625 = vadd.f32 0.0, %v624
        %626 = vmatprep.mubr.bf16.mxu0 0
        %627 = vmatmul.mubr.bf16.gmra.mxu0 %v412
        %v628 = vpop.f32.mrf.mxu0
        %v629 = vadd.f32 0.0, %v628
        %v630 = vpop.f32.mrf.mxu0
        %v631 = vadd.f32 0.0, %v630
        %v632 = vpop.f32.mrf.mxu0
        %v633 = vadd.f32 0.0, %v632
        %v634 = vpop.f32.mrf.mxu0
        %v635 = vadd.f32 0.0, %v634
        %636 = vmatprep.mubr.bf16.mxu0 0
        %637 = vmatmul.mubr.bf16.gmra.mxu0 %v415
        %v638 = vpop.f32.mrf.mxu0
        %v639 = vadd.f32 0.0, %v638
        %v640 = vpop.f32.mrf.mxu0
        %v641 = vadd.f32 0.0, %v640
        %v642 = vpop.f32.mrf.mxu0
        %v643 = vadd.f32 0.0, %v642
        %v644 = vpop.f32.mrf.mxu0
        %v645 = vadd.f32 0.0, %v644
        %646 = vmatprep.mubr.bf16.mxu0 0
        %647 = vmatmul.mubr.bf16.gmra.mxu0 %v418
        %v648 = vpop.f32.mrf.mxu0
        %v649 = vadd.f32 0.0, %v648
        %v650 = vpop.f32.mrf.mxu0
        %v651 = vadd.f32 0.0, %v650
        %v652 = vpop.f32.mrf.mxu0
        %v653 = vadd.f32 0.0, %v652
        %v654 = vpop.f32.mrf.mxu0
        %v655 = vadd.f32 0.0, %v654
        %656 = vmatprep.mubr.bf16.mxu0 0
        %657 = vmatmul.mubr.bf16.gmra.mxu0 %v421
        %v658 = vpop.f32.mrf.mxu0
        %v659 = vadd.f32 0.0, %v658
        %v660 = vpop.f32.mrf.mxu0
        %v661 = vadd.f32 0.0, %v660
        %v662 = vpop.f32.mrf.mxu0
        %v663 = vadd.f32 0.0, %v662
        %v664 = vpop.f32.mrf.mxu0
        %v665 = vadd.f32 0.0, %v664
        %666 = vmatprep.mubr.bf16.mxu0 0
        %667 = vmatmul.mubr.bf16.gmra.mxu0 %v424
        %v668 = vpop.f32.mrf.mxu0
        %v669 = vadd.f32 0.0, %v668
        %v670 = vpop.f32.mrf.mxu0
        %v671 = vadd.f32 0.0, %v670
        %v672 = vpop.f32.mrf.mxu0
        %v673 = vadd.f32 0.0, %v672
        %v674 = vpop.f32.mrf.mxu0
        %v675 = vadd.f32 0.0, %v674
        %676 = vdwg.mxu0
        %677 = vmatprep.subr.bf16.mxu0 0
        %678 = vmatpush1.bf16.msra.mxu0 0
        %679 = vmatprep.subr.bf16.mxu0 0
        %680 = vmatpush1.bf16.msra.mxu0 0
        %681 = vmatprep.subr.bf16.mxu0 0
        %682 = vmatpush1.bf16.msra.mxu0 0
        %683 = vmatprep.subr.bf16.mxu0 0
        %684 = vmatpush1.bf16.msra.mxu0 0
        %685 = vmatprep.subr.bf16.mxu0 0
        %686 = vmatpush1.bf16.msra.mxu0 0
        %687 = vmatprep.subr.bf16.mxu0 %v443
        %688 = vmatpush1.bf16.msra.mxu0 %v440
        %689 = vmatprep.subr.bf16.mxu0 %v374
        %690 = vmatpush1.bf16.msra.mxu0 %v373
        %691 = vmatprep.subr.bf16.mxu0 %v366
        %692 = vmatpush1.bf16.msra.mxu0 %v365
        %693 = vmatprep.subr.bf16.mxu0 0
        %694 = vmatpush2.bf16.msra.mxu0 0
        %695 = vmatprep.subr.bf16.mxu0 0
        %696 = vmatpush2.bf16.msra.mxu0 0
        %697 = vmatprep.subr.bf16.mxu0 0
        %698 = vmatpush2.bf16.msra.mxu0 0
        %699 = vmatprep.subr.bf16.mxu0 0
        %700 = vmatpush2.bf16.msra.mxu0 0
        %701 = vmatprep.subr.bf16.mxu0 0
        %702 = vmatpush2.bf16.msra.mxu0 0
        %703 = vmatprep.subr.bf16.mxu0 0
        %704 = vmatpush2.bf16.msra.mxu0 0
        %705 = vmatprep.subr.bf16.mxu0 0
        %706 = vmatpush2.bf16.msra.mxu0 0
        %707 = vmatprep.subr.bf16.mxu0 0
        %708 = vmatpush2.bf16.msra.mxu0 0
        %709 = vmatprep.mubr.bf16.mxu0 0
        %710 = vmatmul.mubr.bf16.gmra.mxu0 %v403
        %v711 = vpop.f32.mrf.mxu0
        %v712 = vadd.f32 0.0, %v711
        %v713 = vpop.f32.mrf.mxu0
        %v714 = vadd.f32 0.0, %v713
        %v715 = vpop.f32.mrf.mxu0
        %v716 = vadd.f32 0.0, %v715
        %v717 = vpop.f32.mrf.mxu0
        %v718 = vadd.f32 0.0, %v717
        %719 = vmatprep.mubr.bf16.mxu0 0
        %720 = vmatmul.mubr.bf16.gmra.mxu0 %v406
        %v721 = vpop.f32.mrf.mxu0
        %v722 = vadd.f32 0.0, %v721
        %v723 = vpop.f32.mrf.mxu0
        %v724 = vadd.f32 0.0, %v723
        %v725 = vpop.f32.mrf.mxu0
        %v726 = vadd.f32 0.0, %v725
        %v727 = vpop.f32.mrf.mxu0
        %v728 = vadd.f32 0.0, %v727
        %729 = vmatprep.mubr.bf16.mxu0 0
        %730 = vmatmul.mubr.bf16.gmra.mxu0 %v409
        %v731 = vpop.f32.mrf.mxu0
        %v732 = vadd.f32 0.0, %v731
        %v733 = vpop.f32.mrf.mxu0
        %v734 = vadd.f32 0.0, %v733
        %v735 = vpop.f32.mrf.mxu0
        %v736 = vadd.f32 0.0, %v735
        %v737 = vpop.f32.mrf.mxu0
        %v738 = vadd.f32 0.0, %v737
        %739 = vmatprep.mubr.bf16.mxu0 0
        %740 = vmatmul.mubr.bf16.gmra.mxu0 %v412
        %v741 = vpop.f32.mrf.mxu0
        %v742 = vadd.f32 0.0, %v741
        %v743 = vpop.f32.mrf.mxu0
        %v744 = vadd.f32 0.0, %v743
        %v745 = vpop.f32.mrf.mxu0
        %v746 = vadd.f32 0.0, %v745
        %v747 = vpop.f32.mrf.mxu0
        %v748 = vadd.f32 0.0, %v747
        %749 = vmatprep.mubr.bf16.mxu0 0
        %750 = vmatmul.mubr.bf16.gmra.mxu0 %v415
        %v751 = vpop.f32.mrf.mxu0
        %v752 = vadd.f32 0.0, %v751
        %v753 = vpop.f32.mrf.mxu0
        %v754 = vadd.f32 0.0, %v753
        %v755 = vpop.f32.mrf.mxu0
        %v756 = vadd.f32 0.0, %v755
        %v757 = vpop.f32.mrf.mxu0
        %v758 = vadd.f32 0.0, %v757
        %759 = vmatprep.mubr.bf16.mxu0 0
        %760 = vmatmul.mubr.bf16.gmra.mxu0 %v418
        %v761 = vpop.f32.mrf.mxu0
        %v762 = vadd.f32 0.0, %v761
        %v763 = vpop.f32.mrf.mxu0
        %v764 = vadd.f32 0.0, %v763
        %v765 = vpop.f32.mrf.mxu0
        %v766 = vadd.f32 0.0, %v765
        %v767 = vpop.f32.mrf.mxu0
        %v768 = vadd.f32 0.0, %v767
        %769 = vmatprep.mubr.bf16.mxu0 0
        %770 = vmatmul.mubr.bf16.gmra.mxu0 %v421
        %v771 = vpop.f32.mrf.mxu0
        %v772 = vadd.f32 0.0, %v771
        %v773 = vpop.f32.mrf.mxu0
        %v774 = vadd.f32 0.0, %v773
        %v775 = vpop.f32.mrf.mxu0
        %v776 = vadd.f32 0.0, %v775
        %v777 = vpop.f32.mrf.mxu0
        %v778 = vadd.f32 0.0, %v777
        %779 = vmatprep.mubr.bf16.mxu0 0
        %780 = vmatmul.mubr.bf16.gmra.mxu0 %v424
        %v781 = vpop.f32.mrf.mxu0
        %v782 = vadd.f32 0.0, %v781
        %v783 = vpop.f32.mrf.mxu0
        %v784 = vadd.f32 0.0, %v783
        %v785 = vpop.f32.mrf.mxu0
        %v786 = vadd.f32 0.0, %v785
        %v787 = vpop.f32.mrf.mxu0
        %v788 = vadd.f32 0.0, %v787
        %789 = vdwg.mxu0
        %790 = vmatprep.subr.bf16.mxu0 0
        %791 = vmatpush1.bf16.msra.mxu0 0
        %792 = vmatprep.subr.bf16.mxu0 0
        %793 = vmatpush1.bf16.msra.mxu0 0
        %794 = vmatprep.subr.bf16.mxu0 0
        %795 = vmatpush1.bf16.msra.mxu0 0
        %796 = vmatprep.subr.bf16.mxu0 0
        %797 = vmatpush1.bf16.msra.mxu0 0
        %798 = vmatprep.subr.bf16.mxu0 0
        %799 = vmatpush1.bf16.msra.mxu0 0
        %800 = vmatprep.subr.bf16.mxu0 %v449
        %801 = vmatpush1.bf16.msra.mxu0 %v446
        %802 = vmatprep.subr.bf16.mxu0 %v376
        %803 = vmatpush1.bf16.msra.mxu0 %v375
        %804 = vmatprep.subr.bf16.mxu0 %v368
        %805 = vmatpush1.bf16.msra.mxu0 %v367
        %806 = vmatprep.subr.bf16.mxu0 0
        %807 = vmatpush2.bf16.msra.mxu0 0
        %808 = vmatprep.subr.bf16.mxu0 0
        %809 = vmatpush2.bf16.msra.mxu0 0
        %810 = vmatprep.subr.bf16.mxu0 0
        %811 = vmatpush2.bf16.msra.mxu0 0
        %812 = vmatprep.subr.bf16.mxu0 0
        %813 = vmatpush2.bf16.msra.mxu0 0
        %814 = vmatprep.subr.bf16.mxu0 0
        %815 = vmatpush2.bf16.msra.mxu0 0
        %816 = vmatprep.subr.bf16.mxu0 0
        %817 = vmatpush2.bf16.msra.mxu0 0
        %818 = vmatprep.subr.bf16.mxu0 0
        %819 = vmatpush2.bf16.msra.mxu0 0
        %820 = vmatprep.subr.bf16.mxu0 0
        %821 = vmatpush2.bf16.msra.mxu0 0
        %822 = vmatprep.mubr.bf16.mxu0 0
        %823 = vmatmul.mubr.bf16.gmra.mxu0 %v403
        %v824 = vpop.f32.mrf.mxu0
        %v825 = vadd.f32 0.0, %v824
        %v826 = vpop.f32.mrf.mxu0
        %v827 = vadd.f32 0.0, %v826
        %v828 = vpop.f32.mrf.mxu0
        %v829 = vadd.f32 0.0, %v828
        %v830 = vpop.f32.mrf.mxu0
        %v831 = vadd.f32 0.0, %v830
        %832 = vmatprep.mubr.bf16.mxu0 0
        %833 = vmatmul.mubr.bf16.gmra.mxu0 %v406
        %v834 = vpop.f32.mrf.mxu0
        %v835 = vadd.f32 0.0, %v834
        %v836 = vpop.f32.mrf.mxu0
        %v837 = vadd.f32 0.0, %v836
        %v838 = vpop.f32.mrf.mxu0
        %v839 = vadd.f32 0.0, %v838
        %v840 = vpop.f32.mrf.mxu0
        %v841 = vadd.f32 0.0, %v840
        %842 = vmatprep.mubr.bf16.mxu0 0
        %843 = vmatmul.mubr.bf16.gmra.mxu0 %v409
        %v844 = vpop.f32.mrf.mxu0
        %v845 = vadd.f32 0.0, %v844
        %v846 = vpop.f32.mrf.mxu0
        %v847 = vadd.f32 0.0, %v846
        %v848 = vpop.f32.mrf.mxu0
        %v849 = vadd.f32 0.0, %v848
        %v850 = vpop.f32.mrf.mxu0
        %v851 = vadd.f32 0.0, %v850
        %852 = vmatprep.mubr.bf16.mxu0 0
        %853 = vmatmul.mubr.bf16.gmra.mxu0 %v412
        %v854 = vpop.f32.mrf.mxu0
        %v855 = vadd.f32 0.0, %v854
        %v856 = vpop.f32.mrf.mxu0
        %v857 = vadd.f32 0.0, %v856
        %v858 = vpop.f32.mrf.mxu0
        %v859 = vadd.f32 0.0, %v858
        %v860 = vpop.f32.mrf.mxu0
        %v861 = vadd.f32 0.0, %v860
        %862 = vmatprep.mubr.bf16.mxu0 0
        %863 = vmatmul.mubr.bf16.gmra.mxu0 %v415
        %v864 = vpop.f32.mrf.mxu0
        %v865 = vadd.f32 0.0, %v864
        %v866 = vpop.f32.mrf.mxu0
        %v867 = vadd.f32 0.0, %v866
        %v868 = vpop.f32.mrf.mxu0
        %v869 = vadd.f32 0.0, %v868
        %v870 = vpop.f32.mrf.mxu0
        %v871 = vadd.f32 0.0, %v870
        %872 = vmatprep.mubr.bf16.mxu0 0
        %873 = vmatmul.mubr.bf16.gmra.mxu0 %v418
        %v874 = vpop.f32.mrf.mxu0
        %v875 = vadd.f32 0.0, %v874
        %v876 = vpop.f32.mrf.mxu0
        %v877 = vadd.f32 0.0, %v876
        %v878 = vpop.f32.mrf.mxu0
        %v879 = vadd.f32 0.0, %v878
        %v880 = vpop.f32.mrf.mxu0
        %v881 = vadd.f32 0.0, %v880
        %882 = vmatprep.mubr.bf16.mxu0 0
        %883 = vmatmul.mubr.bf16.gmra.mxu0 %v421
        %v884 = vpop.f32.mrf.mxu0
        %v885 = vadd.f32 0.0, %v884
        %v886 = vpop.f32.mrf.mxu0
        %v887 = vadd.f32 0.0, %v886
        %v888 = vpop.f32.mrf.mxu0
        %v889 = vadd.f32 0.0, %v888
        %v890 = vpop.f32.mrf.mxu0
        %v891 = vadd.f32 0.0, %v890
        %892 = vmatprep.mubr.bf16.mxu0 0
        %893 = vmatmul.mubr.bf16.gmra.mxu0 %v424
        %v894 = vpop.f32.mrf.mxu0
        %v895 = vadd.f32 0.0, %v894
        %v896 = vpop.f32.mrf.mxu0
        %v897 = vadd.f32 0.0, %v896
        %v898 = vpop.f32.mrf.mxu0
        %v899 = vadd.f32 0.0, %v898
        %v900 = vpop.f32.mrf.mxu0
        %v901 = vadd.f32 0.0, %v900
        %902 = vdwg.mxu0
        %v903 = vadd.f32 %v486, %v488
        %v904 = vadd.f32 %v903, %v599
        %v905 = vadd.f32 %v904, %v601
        %v906 = vadd.f32 %v905, %v712
        %v907 = vadd.f32 %v906, %v714
        %v908 = vadd.f32 %v907, %v825
        %v909 = vadd.f32 %v908, %v827
        %910 = vadd.xlane.f32.xlu0 %v909
        %v911 = vpop.xlane.xlu0 %910
        %v912 = vadd.f32 %v490, %v492
        %v913 = vadd.f32 %v912, %v603
        %v914 = vadd.f32 %v913, %v605
        %v915 = vadd.f32 %v914, %v716
        %v916 = vadd.f32 %v915, %v718
        %v917 = vadd.f32 %v916, %v829
        %v918 = vadd.f32 %v917, %v831
        %919 = vadd.xlane.f32.xlu0 %v918
        %v920 = vpop.xlane.xlu0 %919
        %v921 = vadd.f32 %v496, %v498
        %v922 = vadd.f32 %v921, %v609
        %v923 = vadd.f32 %v922, %v611
        %v924 = vadd.f32 %v923, %v722
        %v925 = vadd.f32 %v924, %v724
        %v926 = vadd.f32 %v925, %v835
        %v927 = vadd.f32 %v926, %v837
        %928 = vadd.xlane.f32.xlu0 %v927
        %v929 = vpop.xlane.xlu0 %928
        %v930 = vadd.f32 %v500, %v502
        %v931 = vadd.f32 %v930, %v613
        %v932 = vadd.f32 %v931, %v615
        %v933 = vadd.f32 %v932, %v726
        %v934 = vadd.f32 %v933, %v728
        %v935 = vadd.f32 %v934, %v839
        %v936 = vadd.f32 %v935, %v841
        %937 = vadd.xlane.f32.xlu0 %v936
        %v938 = vpop.xlane.xlu0 %937
        %v939 = vadd.f32 %v506, %v508
        %v940 = vadd.f32 %v939, %v619
        %v941 = vadd.f32 %v940, %v621
        %v942 = vadd.f32 %v941, %v732
        %v943 = vadd.f32 %v942, %v734
        %v944 = vadd.f32 %v943, %v845
        %v945 = vadd.f32 %v944, %v847
        %946 = vadd.xlane.f32.xlu0 %v945
        %v947 = vpop.xlane.xlu0 %946
        %v948 = vadd.f32 %v510, %v512
        %v949 = vadd.f32 %v948, %v623
        %v950 = vadd.f32 %v949, %v625
        %v951 = vadd.f32 %v950, %v736
        %v952 = vadd.f32 %v951, %v738
        %v953 = vadd.f32 %v952, %v849
        %v954 = vadd.f32 %v953, %v851
        %955 = vadd.xlane.f32.xlu0 %v954
        %v956 = vpop.xlane.xlu0 %955
        %v957 = vadd.f32 %v516, %v518
        %v958 = vadd.f32 %v957, %v629
        %v959 = vadd.f32 %v958, %v631
        %v960 = vadd.f32 %v959, %v742
        %v961 = vadd.f32 %v960, %v744
        %v962 = vadd.f32 %v961, %v855
        %v963 = vadd.f32 %v962, %v857
        %964 = vadd.xlane.f32.xlu0 %v963
        %v965 = vpop.xlane.xlu0 %964
        %v966 = vadd.f32 %v520, %v522
        %v967 = vadd.f32 %v966, %v633
        %v968 = vadd.f32 %v967, %v635
        %v969 = vadd.f32 %v968, %v746
        %v970 = vadd.f32 %v969, %v748
        %v971 = vadd.f32 %v970, %v859
        %v972 = vadd.f32 %v971, %v861
        %973 = vadd.xlane.f32.xlu0 %v972
        %v974 = vpop.xlane.xlu0 %973
        %v975 = vadd.f32 %v526, %v528
        %v976 = vadd.f32 %v975, %v639
        %v977 = vadd.f32 %v976, %v641
        %v978 = vadd.f32 %v977, %v752
        %v979 = vadd.f32 %v978, %v754
        %v980 = vadd.f32 %v979, %v865
        %v981 = vadd.f32 %v980, %v867
        %982 = vadd.xlane.f32.xlu0 %v981
        %v983 = vpop.xlane.xlu0 %982
        %v984 = vadd.f32 %v530, %v532
        %v985 = vadd.f32 %v984, %v643
        %v986 = vadd.f32 %v985, %v645
        %v987 = vadd.f32 %v986, %v756
        %v988 = vadd.f32 %v987, %v758
        %v989 = vadd.f32 %v988, %v869
        %v990 = vadd.f32 %v989, %v871
        %991 = vadd.xlane.f32.xlu0 %v990
        %v992 = vpop.xlane.xlu0 %991
        %v993 = vadd.f32 %v536, %v538
        %v994 = vadd.f32 %v993, %v649
        %v995 = vadd.f32 %v994, %v651
        %v996 = vadd.f32 %v995, %v762
        %v997 = vadd.f32 %v996, %v764
        %v998 = vadd.f32 %v997, %v875
        %v999 = vadd.f32 %v998, %v877
        %1000 = vadd.xlane.f32.xlu0 %v999
        %v1001 = vpop.xlane.xlu0 %1000
        %v1002 = vadd.f32 %v540, %v542
        %v1003 = vadd.f32 %v1002, %v653
        %v1004 = vadd.f32 %v1003, %v655
        %v1005 = vadd.f32 %v1004, %v766
        %v1006 = vadd.f32 %v1005, %v768
        %v1007 = vadd.f32 %v1006, %v879
        %v1008 = vadd.f32 %v1007, %v881
        %1009 = vadd.xlane.f32.xlu0 %v1008
        %v1010 = vpop.xlane.xlu0 %1009
        %v1011 = vadd.f32 %v546, %v548
        %v1012 = vadd.f32 %v1011, %v659
        %v1013 = vadd.f32 %v1012, %v661
        %v1014 = vadd.f32 %v1013, %v772
        %v1015 = vadd.f32 %v1014, %v774
        %v1016 = vadd.f32 %v1015, %v885
        %v1017 = vadd.f32 %v1016, %v887
        %1018 = vadd.xlane.f32.xlu0 %v1017
        %v1019 = vpop.xlane.xlu0 %1018
        %v1020 = vadd.f32 %v550, %v552
        %v1021 = vadd.f32 %v1020, %v663
        %v1022 = vadd.f32 %v1021, %v665
        %v1023 = vadd.f32 %v1022, %v776
        %v1024 = vadd.f32 %v1023, %v778
        %v1025 = vadd.f32 %v1024, %v889
        %v1026 = vadd.f32 %v1025, %v891
        %1027 = vadd.xlane.f32.xlu0 %v1026
        %v1028 = vpop.xlane.xlu0 %1027
        %v1029 = vadd.f32 %v556, %v558
        %v1030 = vadd.f32 %v1029, %v669
        %v1031 = vadd.f32 %v1030, %v671
        %v1032 = vadd.f32 %v1031, %v782
        %v1033 = vadd.f32 %v1032, %v784
        %v1034 = vadd.f32 %v1033, %v895
        %v1035 = vadd.f32 %v1034, %v897
        %1036 = vadd.xlane.f32.xlu0 %v1035
        %v1037 = vpop.xlane.xlu0 %1036
        %v1038 = vadd.f32 %v560, %v562
        %v1039 = vadd.f32 %v1038, %v673
        %v1040 = vadd.f32 %v1039, %v675
        %v1041 = vadd.f32 %v1040, %v786
        %v1042 = vadd.f32 %v1041, %v788
        %v1043 = vadd.f32 %v1042, %v899
        %v1044 = vadd.f32 %v1043, %v901
        %1045 = vadd.xlane.f32.xlu0 %v1044
        %v1046 = vpop.xlane.xlu0 %1045
        %vm1047 = vcmask 7168
        %1048 = vst.msk [vmem:[%s222] sm:$0xff] %vm1047, %v911
        %1049 = vst.msk [vmem:[%s222 + $0x8] sm:$0xff] %vm1047, %v920
        %1050 = vst.msk [vmem:[%s222 + $0x10] sm:$0xff] %vm1047, %v929
        %1051 = vst.msk [vmem:[%s222 + $0x18] sm:$0xff] %vm1047, %v938
        %1052 = vst.msk [vmem:[%s222 + $0x20] sm:$0xff] %vm1047, %v947
        %1053 = vst.msk [vmem:[%s222 + $0x28] sm:$0xff] %vm1047, %v956
        %1054 = vst.msk [vmem:[%s222 + $0x30] sm:$0xff] %vm1047, %v965
        %1055 = vst.msk [vmem:[%s222 + $0x38] sm:$0xff] %vm1047, %v974
        %1056 = vst.msk [vmem:[%s222 + $0x40] sm:$0xff] %vm1047, %v983
        %1057 = vst.msk [vmem:[%s222 + $0x48] sm:$0xff] %vm1047, %v992
        %1058 = vst.msk [vmem:[%s222 + $0x50] sm:$0xff] %vm1047, %v1001
        %1059 = vst.msk [vmem:[%s222 + $0x58] sm:$0xff] %vm1047, %v1010
        %1060 = vst.msk [vmem:[%s222 + $0x60] sm:$0xff] %vm1047, %v1019
        %1061 = vst.msk [vmem:[%s222 + $0x68] sm:$0xff] %vm1047, %v1028
        %1062 = vst.msk [vmem:[%s222 + $0x70] sm:$0xff] %vm1047, %v1037
        %1063 = vst.msk [vmem:[%s222 + $0x78] sm:$0xff] %vm1047, %v1046
        %v1064 = vmul.f32 %v486, %v486
        %v1065 = vmul.f32 %v488, %v488
        %v1066 = vmul.f32 %v599, %v599
        %v1067 = vmul.f32 %v601, %v601
        %v1068 = vmul.f32 %v712, %v712
        %v1069 = vmul.f32 %v714, %v714
        %v1070 = vmul.f32 %v825, %v825
        %v1071 = vmul.f32 %v827, %v827
        %v1072 = vmul.f32 %v490, %v490
        %v1073 = vmul.f32 %v492, %v492
        %v1074 = vmul.f32 %v603, %v603
        %v1075 = vmul.f32 %v605, %v605
        %v1076 = vmul.f32 %v716, %v716
        %v1077 = vmul.f32 %v718, %v718
        %v1078 = vmul.f32 %v829, %v829
        %v1079 = vmul.f32 %v831, %v831
        %v1080 = vmul.f32 %v496, %v496
        %v1081 = vmul.f32 %v498, %v498
        %v1082 = vmul.f32 %v609, %v609
        %v1083 = vmul.f32 %v611, %v611
        %v1084 = vmul.f32 %v722, %v722
        %v1085 = vmul.f32 %v724, %v724
        %v1086 = vmul.f32 %v835, %v835
        %v1087 = vmul.f32 %v837, %v837
        %v1088 = vmul.f32 %v500, %v500
        %v1089 = vmul.f32 %v502, %v502
        %v1090 = vmul.f32 %v613, %v613
        %v1091 = vmul.f32 %v615, %v615
        %v1092 = vmul.f32 %v726, %v726
        %v1093 = vmul.f32 %v728, %v728
        %v1094 = vmul.f32 %v839, %v839
        %v1095 = vmul.f32 %v841, %v841
        %v1096 = vmul.f32 %v506, %v506
        %v1097 = vmul.f32 %v508, %v508
        %v1098 = vmul.f32 %v619, %v619
        %v1099 = vmul.f32 %v621, %v621
        %v1100 = vmul.f32 %v732, %v732
        %v1101 = vmul.f32 %v734, %v734
        %v1102 = vmul.f32 %v845, %v845
        %v1103 = vmul.f32 %v847, %v847
        %v1104 = vmul.f32 %v510, %v510
        %v1105 = vmul.f32 %v512, %v512
        %v1106 = vmul.f32 %v623, %v623
        %v1107 = vmul.f32 %v625, %v625
        %v1108 = vmul.f32 %v736, %v736
        %v1109 = vmul.f32 %v738, %v738
        %v1110 = vmul.f32 %v849, %v849
        %v1111 = vmul.f32 %v851, %v851
        %v1112 = vmul.f32 %v516, %v516
        %v1113 = vmul.f32 %v518, %v518
        %v1114 = vmul.f32 %v629, %v629
        %v1115 = vmul.f32 %v631, %v631
        %v1116 = vmul.f32 %v742, %v742
        %v1117 = vmul.f32 %v744, %v744
        %v1118 = vmul.f32 %v855, %v855
        %v1119 = vmul.f32 %v857, %v857
        %v1120 = vmul.f32 %v520, %v520
        %v1121 = vmul.f32 %v522, %v522
        %v1122 = vmul.f32 %v633, %v633
        %v1123 = vmul.f32 %v635, %v635
        %v1124 = vmul.f32 %v746, %v746
        %v1125 = vmul.f32 %v748, %v748
        %v1126 = vmul.f32 %v859, %v859
        %v1127 = vmul.f32 %v861, %v861
        %v1128 = vmul.f32 %v526, %v526
        %v1129 = vmul.f32 %v528, %v528
        %v1130 = vmul.f32 %v639, %v639
        %v1131 = vmul.f32 %v641, %v641
        %v1132 = vmul.f32 %v752, %v752
        %v1133 = vmul.f32 %v754, %v754
        %v1134 = vmul.f32 %v865, %v865
        %v1135 = vmul.f32 %v867, %v867
        %v1136 = vmul.f32 %v530, %v530
        %v1137 = vmul.f32 %v532, %v532
        %v1138 = vmul.f32 %v643, %v643
        %v1139 = vmul.f32 %v645, %v645
        %v1140 = vmul.f32 %v756, %v756
        %v1141 = vmul.f32 %v758, %v758
        %v1142 = vmul.f32 %v869, %v869
        %v1143 = vmul.f32 %v871, %v871
        %v1144 = vmul.f32 %v536, %v536
        %v1145 = vmul.f32 %v538, %v538
        %v1146 = vmul.f32 %v649, %v649
        %v1147 = vmul.f32 %v651, %v651
        %v1148 = vmul.f32 %v762, %v762
        %v1149 = vmul.f32 %v764, %v764
        %v1150 = vmul.f32 %v875, %v875
        %v1151 = vmul.f32 %v877, %v877
        %v1152 = vmul.f32 %v540, %v540
        %v1153 = vmul.f32 %v542, %v542
        %v1154 = vmul.f32 %v653, %v653
        %v1155 = vmul.f32 %v655, %v655
        %v1156 = vmul.f32 %v766, %v766
        %v1157 = vmul.f32 %v768, %v768
        %v1158 = vmul.f32 %v879, %v879
        %v1159 = vmul.f32 %v881, %v881
        %v1160 = vmul.f32 %v546, %v546
        %v1161 = vmul.f32 %v548, %v548
        %v1162 = vmul.f32 %v659, %v659
        %v1163 = vmul.f32 %v661, %v661
        %v1164 = vmul.f32 %v772, %v772
        %v1165 = vmul.f32 %v774, %v774
        %v1166 = vmul.f32 %v885, %v885
        %v1167 = vmul.f32 %v887, %v887
        %v1168 = vmul.f32 %v550, %v550
        %v1169 = vmul.f32 %v552, %v552
        %v1170 = vmul.f32 %v663, %v663
        %v1171 = vmul.f32 %v665, %v665
        %v1172 = vmul.f32 %v776, %v776
        %v1173 = vmul.f32 %v778, %v778
        %v1174 = vmul.f32 %v889, %v889
        %v1175 = vmul.f32 %v891, %v891
        %v1176 = vmul.f32 %v556, %v556
        %v1177 = vmul.f32 %v558, %v558
        %v1178 = vmul.f32 %v669, %v669
        %v1179 = vmul.f32 %v671, %v671
        %v1180 = vmul.f32 %v782, %v782
        %v1181 = vmul.f32 %v784, %v784
        %v1182 = vmul.f32 %v895, %v895
        %v1183 = vmul.f32 %v897, %v897
        %v1184 = vmul.f32 %v560, %v560
        %v1185 = vmul.f32 %v562, %v562
        %v1186 = vmul.f32 %v673, %v673
        %v1187 = vmul.f32 %v675, %v675
        %v1188 = vmul.f32 %v786, %v786
        %v1189 = vmul.f32 %v788, %v788
        %v1190 = vmul.f32 %v899, %v899
        %v1191 = vmul.f32 %v901, %v901
        %v1192 = vadd.f32 %v1064, %v1065
        %v1193 = vadd.f32 %v1192, %v1066
        %v1194 = vadd.f32 %v1193, %v1067
        %v1195 = vadd.f32 %v1194, %v1068
        %v1196 = vadd.f32 %v1195, %v1069
        %v1197 = vadd.f32 %v1196, %v1070
        %v1198 = vadd.f32 %v1197, %v1071
        %1199 = vadd.xlane.f32.xlu0 %v1198
        %v1200 = vpop.xlane.xlu0 %1199
        %v1201 = vadd.f32 %v1072, %v1073
        %v1202 = vadd.f32 %v1201, %v1074
        %v1203 = vadd.f32 %v1202, %v1075
        %v1204 = vadd.f32 %v1203, %v1076
        %v1205 = vadd.f32 %v1204, %v1077
        %v1206 = vadd.f32 %v1205, %v1078
        %v1207 = vadd.f32 %v1206, %v1079
        %1208 = vadd.xlane.f32.xlu0 %v1207
        %v1209 = vpop.xlane.xlu0 %1208
        %v1210 = vadd.f32 %v1080, %v1081
        %v1211 = vadd.f32 %v1210, %v1082
        %v1212 = vadd.f32 %v1211, %v1083
        %v1213 = vadd.f32 %v1212, %v1084
        %v1214 = vadd.f32 %v1213, %v1085
        %v1215 = vadd.f32 %v1214, %v1086
        %v1216 = vadd.f32 %v1215, %v1087
        %1217 = vadd.xlane.f32.xlu0 %v1216
        %v1218 = vpop.xlane.xlu0 %1217
        %v1219 = vadd.f32 %v1088, %v1089
        %v1220 = vadd.f32 %v1219, %v1090
        %v1221 = vadd.f32 %v1220, %v1091
        %v1222 = vadd.f32 %v1221, %v1092
        %v1223 = vadd.f32 %v1222, %v1093
        %v1224 = vadd.f32 %v1223, %v1094
        %v1225 = vadd.f32 %v1224, %v1095
        %1226 = vadd.xlane.f32.xlu0 %v1225
        %v1227 = vpop.xlane.xlu0 %1226
        %v1228 = vadd.f32 %v1096, %v1097
        %v1229 = vadd.f32 %v1228, %v1098
        %v1230 = vadd.f32 %v1229, %v1099
        %v1231 = vadd.f32 %v1230, %v1100
        %v1232 = vadd.f32 %v1231, %v1101
        %v1233 = vadd.f32 %v1232, %v1102
        %v1234 = vadd.f32 %v1233, %v1103
        %1235 = vadd.xlane.f32.xlu0 %v1234
        %v1236 = vpop.xlane.xlu0 %1235
        %v1237 = vadd.f32 %v1104, %v1105
        %v1238 = vadd.f32 %v1237, %v1106
        %v1239 = vadd.f32 %v1238, %v1107
        %v1240 = vadd.f32 %v1239, %v1108
        %v1241 = vadd.f32 %v1240, %v1109
        %v1242 = vadd.f32 %v1241, %v1110
        %v1243 = vadd.f32 %v1242, %v1111
        %1244 = vadd.xlane.f32.xlu0 %v1243
        %v1245 = vpop.xlane.xlu0 %1244
        %v1246 = vadd.f32 %v1112, %v1113
        %v1247 = vadd.f32 %v1246, %v1114
        %v1248 = vadd.f32 %v1247, %v1115
        %v1249 = vadd.f32 %v1248, %v1116
        %v1250 = vadd.f32 %v1249, %v1117
        %v1251 = vadd.f32 %v1250, %v1118
        %v1252 = vadd.f32 %v1251, %v1119
        %1253 = vadd.xlane.f32.xlu0 %v1252
        %v1254 = vpop.xlane.xlu0 %1253
        %v1255 = vadd.f32 %v1120, %v1121
        %v1256 = vadd.f32 %v1255, %v1122
        %v1257 = vadd.f32 %v1256, %v1123
        %v1258 = vadd.f32 %v1257, %v1124
        %v1259 = vadd.f32 %v1258, %v1125
        %v1260 = vadd.f32 %v1259, %v1126
        %v1261 = vadd.f32 %v1260, %v1127
        %1262 = vadd.xlane.f32.xlu0 %v1261
        %v1263 = vpop.xlane.xlu0 %1262
        %v1264 = vadd.f32 %v1128, %v1129
        %v1265 = vadd.f32 %v1264, %v1130
        %v1266 = vadd.f32 %v1265, %v1131
        %v1267 = vadd.f32 %v1266, %v1132
        %v1268 = vadd.f32 %v1267, %v1133
        %v1269 = vadd.f32 %v1268, %v1134
        %v1270 = vadd.f32 %v1269, %v1135
        %1271 = vadd.xlane.f32.xlu0 %v1270
        %v1272 = vpop.xlane.xlu0 %1271
        %v1273 = vadd.f32 %v1136, %v1137
        %v1274 = vadd.f32 %v1273, %v1138
        %v1275 = vadd.f32 %v1274, %v1139
        %v1276 = vadd.f32 %v1275, %v1140
        %v1277 = vadd.f32 %v1276, %v1141
        %v1278 = vadd.f32 %v1277, %v1142
        %v1279 = vadd.f32 %v1278, %v1143
        %1280 = vadd.xlane.f32.xlu0 %v1279
        %v1281 = vpop.xlane.xlu0 %1280
        %v1282 = vadd.f32 %v1144, %v1145
        %v1283 = vadd.f32 %v1282, %v1146
        %v1284 = vadd.f32 %v1283, %v1147
        %v1285 = vadd.f32 %v1284, %v1148
        %v1286 = vadd.f32 %v1285, %v1149
        %v1287 = vadd.f32 %v1286, %v1150
        %v1288 = vadd.f32 %v1287, %v1151
        %1289 = vadd.xlane.f32.xlu0 %v1288
        %v1290 = vpop.xlane.xlu0 %1289
        %v1291 = vadd.f32 %v1152, %v1153
        %v1292 = vadd.f32 %v1291, %v1154
        %v1293 = vadd.f32 %v1292, %v1155
        %v1294 = vadd.f32 %v1293, %v1156
        %v1295 = vadd.f32 %v1294, %v1157
        %v1296 = vadd.f32 %v1295, %v1158
        %v1297 = vadd.f32 %v1296, %v1159
        %1298 = vadd.xlane.f32.xlu0 %v1297
        %v1299 = vpop.xlane.xlu0 %1298
        %v1300 = vadd.f32 %v1160, %v1161
        %v1301 = vadd.f32 %v1300, %v1162
        %v1302 = vadd.f32 %v1301, %v1163
        %v1303 = vadd.f32 %v1302, %v1164
        %v1304 = vadd.f32 %v1303, %v1165
        %v1305 = vadd.f32 %v1304, %v1166
        %v1306 = vadd.f32 %v1305, %v1167
        %1307 = vadd.xlane.f32.xlu0 %v1306
        %v1308 = vpop.xlane.xlu0 %1307
        %v1309 = vadd.f32 %v1168, %v1169
        %v1310 = vadd.f32 %v1309, %v1170
        %v1311 = vadd.f32 %v1310, %v1171
        %v1312 = vadd.f32 %v1311, %v1172
        %v1313 = vadd.f32 %v1312, %v1173
        %v1314 = vadd.f32 %v1313, %v1174
        %v1315 = vadd.f32 %v1314, %v1175
        %1316 = vadd.xlane.f32.xlu0 %v1315
        %v1317 = vpop.xlane.xlu0 %1316
        %v1318 = vadd.f32 %v1176, %v1177
        %v1319 = vadd.f32 %v1318, %v1178
        %v1320 = vadd.f32 %v1319, %v1179
        %v1321 = vadd.f32 %v1320, %v1180
        %v1322 = vadd.f32 %v1321, %v1181
        %v1323 = vadd.f32 %v1322, %v1182
        %v1324 = vadd.f32 %v1323, %v1183
        %1325 = vadd.xlane.f32.xlu0 %v1324
        %v1326 = vpop.xlane.xlu0 %1325
        %v1327 = vadd.f32 %v1184, %v1185
        %v1328 = vadd.f32 %v1327, %v1186
        %v1329 = vadd.f32 %v1328, %v1187
        %v1330 = vadd.f32 %v1329, %v1188
        %v1331 = vadd.f32 %v1330, %v1189
        %v1332 = vadd.f32 %v1331, %v1190
        %v1333 = vadd.f32 %v1332, %v1191
        %1334 = vadd.xlane.f32.xlu0 %v1333
        %v1335 = vpop.xlane.xlu0 %1334
        %vm1336 = vcmask 15368
        %1337 = vst.msk [vmem:[%s222] sm:$0xff] %vm1336, %v1200
        %1338 = vst.msk [vmem:[%s222 + $0x8] sm:$0xff] %vm1336, %v1209
        %1339 = vst.msk [vmem:[%s222 + $0x10] sm:$0xff] %vm1336, %v1218
        %1340 = vst.msk [vmem:[%s222 + $0x18] sm:$0xff] %vm1336, %v1227
        %1341 = vst.msk [vmem:[%s222 + $0x20] sm:$0xff] %vm1336, %v1236
        %1342 = vst.msk [vmem:[%s222 + $0x28] sm:$0xff] %vm1336, %v1245
        %1343 = vst.msk [vmem:[%s222 + $0x30] sm:$0xff] %vm1336, %v1254
        %1344 = vst.msk [vmem:[%s222 + $0x38] sm:$0xff] %vm1336, %v1263
        %1345 = vst.msk [vmem:[%s222 + $0x40] sm:$0xff] %vm1336, %v1272
        %1346 = vst.msk [vmem:[%s222 + $0x48] sm:$0xff] %vm1336, %v1281
        %1347 = vst.msk [vmem:[%s222 + $0x50] sm:$0xff] %vm1336, %v1290
        %1348 = vst.msk [vmem:[%s222 + $0x58] sm:$0xff] %vm1336, %v1299
        %1349 = vst.msk [vmem:[%s222 + $0x60] sm:$0xff] %vm1336, %v1308
        %1350 = vst.msk [vmem:[%s222 + $0x68] sm:$0xff] %vm1336, %v1317
        %1351 = vst.msk [vmem:[%s222 + $0x70] sm:$0xff] %vm1336, %v1326
        %1352 = vst.msk [vmem:[%s222 + $0x78] sm:$0xff] %vm1336, %v1335
        %s1353 = sadd.s32 %s17, %s18
        %p1354 = scmp.lt.s32.totalorder %s1353, 1
        %s1355 = scalar_select %p1354, %s1353, 1
        %s1356 = smul.addr %s1355, 16
        %s1357 = smul.addr %s1356, 8
        %s1358 = scalar_lea.vmem %s2, %s1357
        // Predicated region
        $region52: #{up_conv2d_block_cbn.2} parent=46 // pred_check
          %p1359 = pneg %p94
        $region53: #{up_conv2d_block_cbn.2} parent=46 // pred_check_branch
          %1361 = sbr.rel (%p1359) target = $region55
        $region54: #{up_conv2d_block_cbn.2} parent=46 // pred_region
          %s1362 = sadd.s32 %s17, %s18
        $region55: #{up_conv2d_block_cbn.2} parent=46 // pred_fallthru
          _
      $region47: #{up_conv2d_block_cbn.2} parent=5 // pred_fallthru
        _
      %p1363 = scmp.le.s32.totalorder 2, %s8
      // Predicated region
      $region56: #{up_conv2d_block_cbn.2} parent=5 // pred_check
        %p1364 = pneg %p1363
      $region57: #{up_conv2d_block_cbn.2} parent=5 // pred_check_branch
        %1366 = sbr.rel (%p1364) target = $region59
      $region58: #{up_conv2d_block_cbn.2} parent=5 // pred_region
        %s1367 = ssub.s32 %s8, 2
        // Predicated region
        $region60: #{up_conv2d_block_cbn.2} parent=58 // pred_check
          %p1368 = pneg %p100
        $region61: #{up_conv2d_block_cbn.2} parent=58 // pred_check_branch
          %1370 = sbr.rel (%p1368) target = $region63
        $region62: #{up_conv2d_block_cbn.2} parent=58 // pred_region
          %s1371 = sadd.s32 %s19, %s20
          %p1372 = scmp.lt.s32.totalorder %s1371, 1
          %s1373 = scalar_select %p1372, %s1371, 1
          %s1374 = smul.addr %s1373, 16
          %s1375 = smul.addr %s1374, 8
          %s1376 = scalar_lea.vmem %s2, %s1375
        $region63: #{up_conv2d_block_cbn.2} parent=58 // pred_fallthru
          _
      $region59: #{up_conv2d_block_cbn.2} parent=5 // pred_fallthru
        _
    $region6: #{up_conv2d_block_cbn.2} parent=1 // loop_footer
      %s12 = sadd.s32 1, %s8
    $region7: #{up_conv2d_block_cbn.2} parent=1 // loop_footer_branch
      %7 = sbr.rel target = $region3
    $region8: #{up_conv2d_block_cbn.2} parent=1 // loop_exit
      _

// kernel: up_conv2d_block_cbn.3
$region0: #{up_conv2d_block_cbn.3}
  #allocation0 [shape = 'u32[]', space=smem, size = 0x4, offset = 0x4, fixed_abs, tag = 'smem constant byte address 0x4 - core index']
  #allocation1 [shape = 'u32[144,128]{1,0:T(1,128)}', space=vmem, size = 0x12000, scoped, tag = 'internal scratch']
  %s0 = inlined_call_operand.vmem [shape: bf16[40,2048], index: 0, kind: input, shape index: {}]
  %s1 = inlined_call_operand.vmem [shape: bf16[128,40], index: 1, kind: input, shape index: {}]
  %s2 = inlined_call_operand.vmem [shape: f32[2,128,1], index: 2, kind: input, shape index: {}]
  %s3 = inlined_call_operand.vmem [shape: f32[2,128,1], index: 3, kind: input, shape index: {}]
  %s4 = inlined_call_operand.vmem [shape: f32[2,8,1024], index: 4, kind: output, shape index: {}]
  %s5 = sld [smem:[#allocation0]]
  $region72: #{up_conv2d_block_cbn.3} parent=0
    _
  %s7 = ssub.s32 1, %s5
  %s8 = scalar_select 0, %s7, %s5
  $region1: #{up_conv2d_block_cbn.3} parent=0
    #allocation2 [shape = 'u8[163840]{0}', space=vmem, size = 0x28000, scoped, tag = 'input window, operand 0']
    loop: start=0, step=1, limit=4
    $region2: #{up_conv2d_block_cbn.3} parent=1 // loop_pre_header
      _
    $region3: #{up_conv2d_block_cbn.3} parent=1 // loop_header
      %s10 = sphi 0, %s14
      %p11 = scmp.ge.s32.totalorder %s10, 4
      %s17 = sphi 0, %s29
      %s18 = sphi 0, %s25
      %s19 = sphi 0, %s17
      %s20 = sphi 0, %s18
      %s21 = sphi 0, %s19
      %s22 = sphi 0, %s20
      %s34 = sphi 0, %s36
      %s37 = sphi 0, %s34
      %s38 = sphi 0, %s37
      %s54 = sphi 0, %s38
      %s58 = sphi 0, %s58
      %s60 = sphi 0, %s58
      %s61 = sphi 0, %s60
      %s75 = sphi 0, %s61
      %s81 = sphi 0, %s83
      %s84 = sphi 0, %s81
      %s85 = sphi 0, %s84
      %s101 = sphi 0, %s85
      %s107 = sphi 0, %s109
      %s110 = sphi 0, %s107
      %s111 = sphi 0, %s110
      %s127 = sphi 0, %s111
      %s135 = sphi 0, %s137
      %s138 = sphi 0, %s135
      %s139 = sphi 0, %s138
      %s155 = sphi 0, %s139
    $region4: #{up_conv2d_block_cbn.3} parent=1 // loop_header_branch
      %13 = sbr.rel (%p11) target = $region8
    $region5: #{up_conv2d_block_cbn.3} parent=1 // loop_body
      %s15 = ssub.s32 %s10, 1
      %s16 = ssub.s32 %s10, 2
      %s23 = sadd.s32 1, %s18
      %p24 = scmp.ge.s32.totalorder %s23, 1
      %s25 = scalar_select %p24, 0, %s23
      %s26 = sadd.s32 1, %s17
      %s27 = scalar_select %p24, %s26, %s17
      %p28 = scmp.ge.s32.totalorder %s27, 2
      %s29 = scalar_select %p28, 0, %s27
      %s30 = sadd.s32 %s17, %s18
      %s31 = sadd.s32 %s29, %s25
      %s32 = ssub.s32 %s30, %s31
      %p33 = scmp.eq.s32.totalorder %s32, 0
      %s35 = sadd.s32 %s34, 1
      %s36 = scalar_select %p33, %s34, %s35
      %p39 = pneg %p33
      %p40 = scmp.eq.s32.totalorder %s10, 1
      %p41 = por %p39, %p40
      %p42 = scmp.ne.s32.totalorder %s34, %s37
      %p43 = scmp.eq.s32.totalorder %s10, 0
      %p44 = por %p42, %p43
      %p45 = scmp.ne.s32.totalorder %s34, %s37
      %p46 = scmp.eq.s32.totalorder %s15, 1
      %p47 = por %p45, %p46
      %p48 = scmp.ne.s32.totalorder %s37, %s38
      %p49 = scmp.eq.s32.totalorder %s15, 0
      %p50 = por %p48, %p49
      %p51 = scmp.ne.s32.totalorder %s37, %s38
      %p52 = scmp.eq.s32.totalorder %s16, 1
      %p53 = por %p51, %p52
      %p55 = scmp.ne.s32.totalorder %s38, %s54
      %p56 = scmp.eq.s32.totalorder %s16, 0
      %p57 = por %p55, %p56
      %s59 = sadd.s32 %s58, 1
      %p62 = scmp.eq.s32.totalorder %s10, 1
      %p63 = scmp.ne.s32.totalorder %s58, %s60
      %p64 = scmp.eq.s32.totalorder %s10, 0
      %p65 = por %p63, %p64
      %p66 = scmp.ne.s32.totalorder %s58, %s60
      %p67 = scmp.eq.s32.totalorder %s15, 1
      %p68 = por %p66, %p67
      %p69 = scmp.ne.s32.totalorder %s60, %s61
      %p70 = scmp.eq.s32.totalorder %s15, 0
      %p71 = por %p69, %p70
      %p72 = scmp.ne.s32.totalorder %s60, %s61
      %p73 = scmp.eq.s32.totalorder %s16, 1
      %p74 = por %p72, %p73
      %p76 = scmp.ne.s32.totalorder %s61, %s75
      %p77 = scmp.eq.s32.totalorder %s16, 0
      %p78 = por %p76, %p77
      %s79 = ssub.s32 %s17, %s29
      %p80 = scmp.eq.s32.totalorder %s79, 0
      %s82 = sadd.s32 %s81, 1
      %s83 = scalar_select %p80, %s81, %s82
      %p86 = pneg %p80
      %p87 = scmp.eq.s32.totalorder %s10, 1
      %p88 = por %p86, %p87
      %p89 = scmp.ne.s32.totalorder %s81, %s84
      %p90 = scmp.eq.s32.totalorder %s10, 0
      %p91 = por %p89, %p90
      %p92 = scmp.ne.s32.totalorder %s81, %s84
      %p93 = scmp.eq.s32.totalorder %s15, 1
      %p94 = por %p92, %p93
      %p95 = scmp.ne.s32.totalorder %s84, %s85
      %p96 = scmp.eq.s32.totalorder %s15, 0
      %p97 = por %p95, %p96
      %p98 = scmp.ne.s32.totalorder %s84, %s85
      %p99 = scmp.eq.s32.totalorder %s16, 1
      %p100 = por %p98, %p99
      %p102 = scmp.ne.s32.totalorder %s85, %s101
      %p103 = scmp.eq.s32.totalorder %s16, 0
      %p104 = por %p102, %p103
      %s105 = ssub.s32 %s17, %s29
      %p106 = scmp.eq.s32.totalorder %s105, 0
      %s108 = sadd.s32 %s107, 1
      %s109 = scalar_select %p106, %s107, %s108
      %p112 = pneg %p106
      %p113 = scmp.eq.s32.totalorder %s10, 1
      %p114 = por %p112, %p113
      %p115 = scmp.ne.s32.totalorder %s107, %s110
      %p116 = scmp.eq.s32.totalorder %s10, 0
      %p117 = por %p115, %p116
      %p118 = scmp.ne.s32.totalorder %s107, %s110
      %p119 = scmp.eq.s32.totalorder %s15, 1
      %p120 = por %p118, %p119
      %p121 = scmp.ne.s32.totalorder %s110, %s111
      %p122 = scmp.eq.s32.totalorder %s15, 0
      %p123 = por %p121, %p122
      %p124 = scmp.ne.s32.totalorder %s110, %s111
      %p125 = scmp.eq.s32.totalorder %s16, 1
      %p126 = por %p124, %p125
      %p128 = scmp.ne.s32.totalorder %s111, %s127
      %p129 = scmp.eq.s32.totalorder %s16, 0
      %p130 = por %p128, %p129
      %s131 = ssub.s32 %s17, %s29
      %s132 = ssub.s32 %s18, %s25
      %s133 = sor.u32 %s131, %s132
      %p134 = scmp.eq.s32.totalorder %s133, 0
      %s136 = sadd.s32 %s135, 1
      %s137 = scalar_select %p134, %s135, %s136
      %p140 = pneg %p134
      %p141 = scmp.eq.s32.totalorder %s10, 1
      %p142 = por %p140, %p141
      %p143 = scmp.ne.s32.totalorder %s135, %s138
      %p144 = scmp.eq.s32.totalorder %s10, 0
      %p145 = por %p143, %p144
      %p146 = scmp.ne.s32.totalorder %s135, %s138
      %p147 = scmp.eq.s32.totalorder %s15, 1
      %p148 = por %p146, %p147
      %p149 = scmp.ne.s32.totalorder %s138, %s139
      %p150 = scmp.eq.s32.totalorder %s15, 0
      %p151 = por %p149, %p150
      %p152 = scmp.ne.s32.totalorder %s138, %s139
      %p153 = scmp.eq.s32.totalorder %s16, 1
      %p154 = por %p152, %p153
      %p156 = scmp.ne.s32.totalorder %s139, %s155
      %p157 = scmp.eq.s32.totalorder %s16, 0
      %p158 = por %p156, %p157
      %p159 = scmp.le.s32.totalorder 1, %s10
      %p160 = scmp.lt.s32.totalorder %s10, 3
      %p161 = pnand %p159, %p160
      %p162 = pneg %p161
      // Predicated region
      $region9: #{up_conv2d_block_cbn.3} parent=5 // pred_check
        _
      $region10: #{up_conv2d_block_cbn.3} parent=5 // pred_check_branch
        %164 = sbr.rel (%p161) target = $region12
      $region11: #{up_conv2d_block_cbn.3} parent=5 // pred_region
        %s165 = ssub.s32 %s10, 1
        // Predicated region
        $region13: #{up_conv2d_block_cbn.3} parent=11 // pred_check
          %p166 = pneg %p71
        $region14: #{up_conv2d_block_cbn.3} parent=11 // pred_check_branch
          %168 = sbr.rel (%p166) target = $region16
        $region15: #{up_conv2d_block_cbn.3} parent=11 // pred_region
          _
        $region16: #{up_conv2d_block_cbn.3} parent=11 // pred_fallthru
          _
      $region12: #{up_conv2d_block_cbn.3} parent=5 // pred_fallthru
        _
      %p169 = scmp.lt.s32.totalorder %s10, 2
      // Predicated region
      $region17: #{up_conv2d_block_cbn.3} parent=5 // pred_check
        %p170 = pneg %p169
      $region18: #{up_conv2d_block_cbn.3} parent=5 // pred_check_branch
        %172 = sbr.rel (%p170) target = $region20
      $region19: #{up_conv2d_block_cbn.3} parent=5 // pred_region
        // Predicated region
        $region21: #{up_conv2d_block_cbn.3} parent=19 // pred_check
          %p173 = pneg %p44
        $region22: #{up_conv2d_block_cbn.3} parent=19 // pred_check_branch
          %175 = sbr.rel (%p173) target = $region24
        $region23: #{up_conv2d_block_cbn.3} parent=19 // pred_region
          %s176 = sand.u32 %s34, 1
          %s177 = sand.u32 %s34, 1
          %s178 = smul.addr %s177, 160
          %s179 = scalar_lea.vmem [#allocation2], %s178
          %s180 = sadd.s32 %s17, %s18
          %s181 = smul.u32 8, %s180
          %s182 = smul.addr %s181, 4
          %s183 = scalar_lea.vmem %s0, %s182
          // Predicated region
          $region25: #{up_conv2d_block_cbn.3} parent=23 // pred_check
            _
          $region26: #{up_conv2d_block_cbn.3} parent=23 // pred_check_branch
            %185 = sbr.rel (0) target = $region28
          $region27: #{up_conv2d_block_cbn.3} parent=23 // pred_region
            // Predicated region
            $region29: #{up_conv2d_block_cbn.3} parent=27 // pred_check
              _
            $region30: #{up_conv2d_block_cbn.3} parent=27 // pred_check_branch
              %187 = sbr.rel (0) target = $region32
            $region31: #{up_conv2d_block_cbn.3} parent=27 // pred_region
              loop: start=0, step=1, limit=1
              $region33: #{up_conv2d_block_cbn.3} parent=31 // loop_pre_header
                _
              $region34: #{up_conv2d_block_cbn.3} parent=31 // loop_header
                %s189 = sphi 0, %s193
                %p190 = scmp.ge.s32.totalorder %s189, 1
                %s194 = sphi %s183, %s183
                %s195 = sphi %s179, %s179
              $region35: #{up_conv2d_block_cbn.3} parent=31 // loop_header_branch
                %192 = sbr.rel (%p190) target = $region39
              $region36: #{up_conv2d_block_cbn.3} parent=31 // loop_body
                %v196 = vld [vmem:[%s194] sm:$0xff]
                %197 = vst [vmem:[%s195] sm:$0xff] %v196
                %v198 = vld [vmem:[%s194 + $0x8] sm:$0xff]
                %199 = vst [vmem:[%s195 + $0x8] sm:$0xff] %v198
                %v200 = vld [vmem:[%s194 + $0x10] sm:$0xff]
                %201 = vst [vmem:[%s195 + $0x10] sm:$0xff] %v200
                %v202 = vld [vmem:[%s194 + $0x18] sm:$0xff]
                %203 = vst [vmem:[%s195 + $0x18] sm:$0xff] %v202
                %v204 = vld [vmem:[%s194 + $0x40] sm:$0xff]
                %205 = vst [vmem:[%s195 + $0x20] sm:$0xff] %v204
                %v206 = vld [vmem:[%s194 + $0x48] sm:$0xff]
                %207 = vst [vmem:[%s195 + $0x28] sm:$0xff] %v206
                %v208 = vld [vmem:[%s194 + $0x50] sm:$0xff]
                %209 = vst [vmem:[%s195 + $0x30] sm:$0xff] %v208
                %v210 = vld [vmem:[%s194 + $0x58] sm:$0xff]
                %211 = vst [vmem:[%s195 + $0x38] sm:$0xff] %v210
                %v212 = vld [vmem:[%s194 + $0x80] sm:$0xff]
                %213 = vst [vmem:[%s195 + $0x40] sm:$0xff] %v212
                %v214 = vld [vmem:[%s194 + $0x88] sm:$0xff]
                %215 = vst [vmem:[%s195 + $0x48] sm:$0xff] %v214
                %v216 = vld [vmem:[%s194 + $0x90] sm:$0xff]
                %217 = vst [vmem:[%s195 + $0x50] sm:$0xff] %v216
                %v218 = vld [vmem:[%s194 + $0x98] sm:$0xff]
                %219 = vst [vmem:[%s195 + $0x58] sm:$0xff] %v218
                %v220 = vld [vmem:[%s194 + $0xc0] sm:$0xff]
                %221 = vst [vmem:[%s195 + $0x60] sm:$0xff] %v220
                %v222 = vld [vmem:[%s194 + $0xc8] sm:$0xff]
                %223 = vst [vmem:[%s195 + $0x68] sm:$0xff] %v222
                %v224 = vld [vmem:[%s194 + $0xd0] sm:$0xff]
                %225 = vst [vmem:[%s195 + $0x70] sm:$0xff] %v224
                %v226 = vld [vmem:[%s194 + $0xd8] sm:$0xff]
                %227 = vst [vmem:[%s195 + $0x78] sm:$0xff] %v226
                %v228 = vld [vmem:[%s194 + $0x100] sm:$0xff]
                %229 = vst [vmem:[%s195 + $0x80] sm:$0xff] %v228
                %v230 = vld [vmem:[%s194 + $0x108] sm:$0xff]
                %231 = vst [vmem:[%s195 + $0x88] sm:$0xff] %v230
                %v232 = vld [vmem:[%s194 + $0x110] sm:$0xff]
                %233 = vst [vmem:[%s195 + $0x90] sm:$0xff] %v232
                %v234 = vld [vmem:[%s194 + $0x118] sm:$0xff]
                %235 = vst [vmem:[%s195 + $0x98] sm:$0xff] %v234
              $region37: #{up_conv2d_block_cbn.3} parent=31 // loop_footer
                %s193 = sadd.s32 1, %s189
              $region38: #{up_conv2d_block_cbn.3} parent=31 // loop_footer_branch
                %188 = sbr.rel target = $region34
              $region39: #{up_conv2d_block_cbn.3} parent=31 // loop_exit
                _
            $region32: #{up_conv2d_block_cbn.3} parent=27 // pred_fallthru
              _
            // Predicated region
            $region40: #{up_conv2d_block_cbn.3} parent=27 // pred_check
              _
            $region41: #{up_conv2d_block_cbn.3} parent=27 // pred_check_branch
              %237 = sbr.rel target = $region43
            $region42: #{up_conv2d_block_cbn.3} parent=27 // pred_region
              _
            $region43: #{up_conv2d_block_cbn.3} parent=27 // pred_fallthru
              _
          $region28: #{up_conv2d_block_cbn.3} parent=23 // pred_fallthru
            _
          %238 = vnop
        $region24: #{up_conv2d_block_cbn.3} parent=19 // pred_fallthru
          _
        // Predicated region
        $region44: #{up_conv2d_block_cbn.3} parent=19 // pred_check
          %p239 = pneg %p91
        $region45: #{up_conv2d_block_cbn.3} parent=19 // pred_check_branch
          %241 = sbr.rel (%p239) target = $region47
        $region46: #{up_conv2d_block_cbn.3} parent=19 // pred_region
          %p242 = scmp.lt.s32.totalorder %s17, 1
          %s243 = scalar_select %p242, %s17, 1
          %s244 = smul.addr %s243, 16
          %s245 = smul.addr %s244, 8
          %s246 = scalar_lea.vmem %s2, %s245
        $region47: #{up_conv2d_block_cbn.3} parent=19 // pred_fallthru
          _
        // Predicated region
        $region48: #{up_conv2d_block_cbn.3} parent=19 // pred_check
          %p247 = pneg %p117
        $region49: #{up_conv2d_block_cbn.3} parent=19 // pred_check_branch
          %249 = sbr.rel (%p247) target = $region51
        $region50: #{up_conv2d_block_cbn.3} parent=19 // pred_region
          %p250 = scmp.lt.s32.totalorder %s17, 1
          %s251 = scalar_select %p250, %s17, 1
          %s252 = smul.addr %s251, 16
          %s253 = smul.addr %s252, 8
          %s254 = scalar_lea.vmem %s3, %s253
        $region51: #{up_conv2d_block_cbn.3} parent=19 // pred_fallthru
          _
      $region20: #{up_conv2d_block_cbn.3} parent=5 // pred_fallthru
        _
      %p255 = scmp.le.s32.totalorder 1, %s10
      %p256 = scmp.lt.s32.totalorder %s10, 3
      %p257 = pnand %p255, %p256
      %p258 = pneg %p257
      // Predicated region
      $region52: #{up_conv2d_block_cbn.3} parent=5 // pred_check
        _
      $region53: #{up_conv2d_block_cbn.3} parent=5 // pred_check_branch
        %260 = sbr.rel (%p257) target = $region55
      $region54: #{up_conv2d_block_cbn.3} parent=5 // pred_region
        %s261 = ssub.s32 %s10, 1
        %s262 = sand.u32 %s37, 1
        %s263 = sand.u32 %s37, 1
        %s264 = smul.addr %s263, 160
        %s265 = scalar_lea.vmem [#allocation2], %s264
        // Predicated region
        $region56: #{up_conv2d_block_cbn.3} parent=54 // pred_check
          %p266 = pneg %p50
        $region57: #{up_conv2d_block_cbn.3} parent=54 // pred_check_branch
          %268 = sbr.rel (%p266) target = $region59
        $region58: #{up_conv2d_block_cbn.3} parent=54 // pred_region
          _
        $region59: #{up_conv2d_block_cbn.3} parent=54 // pred_fallthru
          _
        %s269 = sand.u32 %s37, 1
        %s270 = sand.u32 %s37, 1
        %s271 = smul.addr %s270, 160
        %s272 = scalar_lea.vmem [#allocation2], %s271
        %p273 = pneg %p50
        %p274 = pneg %p47
        %p275 = pneg %p71
        %p276 = pneg %p68
        %p277 = scmp.lt.s32.totalorder %s19, 1
        %s278 = scalar_select %p277, %s19, 1
        %s279 = smul.addr %s278, 16
        %s280 = smul.addr %s279, 8
        %s281 = scalar_lea.vmem %s2, %s280
        %p282 = pneg %p97
        %p283 = pneg %p94
        %p284 = scmp.lt.s32.totalorder %s19, 1
        %s285 = scalar_select %p284, %s19, 1
        %s286 = smul.addr %s285, 16
        %s287 = smul.addr %s286, 8
        %s288 = scalar_lea.vmem %s3, %s287
        %p289 = pneg %p123
        %p290 = pneg %p120
        %p291 = pneg %p151
        %p292 = pneg %p148
        %s293 = smul.u32 8, %s20
        %p294 = scmp.lt.s32.totalorder %s19, 1
        %s295 = scalar_select %p294, %s19, 1
        %p296 = scmp.lt.s32.totalorder %s293, 7
        %s297 = scalar_select %p296, %s293, 7
        %s298 = smul.addr %s295, 8
        %s299 = sadd.s32 %s297, %s298
        %s300 = smul.addr %s299, 8
        %s301 = scalar_lea.vmem %s4, %s300
        %s302 = sadd.s32 %s19, %s20
        %s303 = smul.u32 8, %s302
        %p304 = scmp.lt.s32.totalorder %s19, 1
        %s305 = scalar_select %p304, %s19, 1
        %s306 = smul.addr %s305, 16
        %s307 = smul.addr %s306, 8
        %s308 = scalar_lea.vmem %s2, %s307
        %p309 = scmp.lt.s32.totalorder %s19, 1
        %s310 = scalar_select %p309, %s19, 1
        %s311 = smul.addr %s310, 16
        %s312 = smul.addr %s311, 8
        %s313 = scalar_lea.vmem %s3, %s312
        %s314 = smul.u32 8, %s20
        %p315 = scmp.lt.s32.totalorder %s19, 1
        %s316 = scalar_select %p315, %s19, 1
        %p317 = scmp.lt.s32.totalorder %s314, 7
        %s318 = scalar_select %p317, %s314, 7
        %s319 = smul.addr %s316, 8
        %s320 = sadd.s32 %s318, %s319
        %s321 = smul.addr %s320, 8
        %s322 = scalar_lea.vmem %s4, %s321
        %s323 = smul.u32 8, %s20
        %v325 = vld [vmem:[%s1] sm:$0xf]
        %v326 = vld [vmem:[%s1 + $0x4] sm:$0xf]
        %v327 = vld [vmem:[%s1 + $0x8] sm:$0xf]
        %v328 = vld [vmem:[%s1 + $0xc] sm:$0xf]
        %v329 = vld [vmem:[%s1 + $0x10] sm:$0xf]
        %v330 = vld [vmem:[%s1 + $0x14] sm:$0xf]
        %v331 = vld [vmem:[%s1 + $0x18] sm:$0xf]
        %v332 = vld [vmem:[%s1 + $0x1c] sm:$0xf]
        %v333 = vld [vmem:[%s1 + $0x20] sm:$0xf]
        %v334 = vld [vmem:[%s1 + $0x24] sm:$0xf]
        %v335 = vld [vmem:[%s1 + $0x28] sm:$0xf]
        %v336 = vld [vmem:[%s1 + $0x2c] sm:$0xf]
        %v337 = vld [vmem:[%s1 + $0x30] sm:$0xf]
        %v338 = vld [vmem:[%s1 + $0x34] sm:$0xf]
        %v339 = vld [vmem:[%s1 + $0x38] sm:$0xf]
        %v340 = vld [vmem:[%s1 + $0x3c] sm:$0xf]
        %v341 = vld [vmem:[%s265] sm:$0xff]
        %v342 = vld [vmem:[%s265 + $0x8] sm:$0xff]
        %v343 = vld [vmem:[%s265 + $0x10] sm:$0xff]
        %v344 = vld [vmem:[%s265 + $0x18] sm:$0xff]
        %v345 = vld [vmem:[%s265 + $0x20] sm:$0xff]
        %v346 = vld [vmem:[%s265 + $0x28] sm:$0xff]
        %v347 = vld [vmem:[%s265 + $0x30] sm:$0xff]
        %v348 = vld [vmem:[%s265 + $0x38] sm:$0xff]
        %v349 = vld [vmem:[%s265 + $0x40] sm:$0xff]
        %v350 = vld [vmem:[%s265 + $0x48] sm:$0xff]
        %v351 = vld [vmem:[%s265 + $0x50] sm:$0xff]
        %v352 = vld [vmem:[%s265 + $0x58] sm:$0xff]
        %v353 = vld [vmem:[%s265 + $0x60] sm:$0xff]
        %v354 = vld [vmem:[%s265 + $0x68] sm:$0xff]
        %v355 = vld [vmem:[%s265 + $0x70] sm:$0xff]
        %v356 = vld [vmem:[%s265 + $0x78] sm:$0xff]
        %v357 = vld [vmem:[%s265 + $0x80] sm:$0xff]
        %v358 = vld [vmem:[%s265 + $0x88] sm:$0xff]
        %v359 = vld [vmem:[%s265 + $0x90] sm:$0xff]
        %v360 = vld [vmem:[%s265 + $0x98] sm:$0xff]
        %v377 = vunpack.c.l.b16 %v325
        %v378 = vunpack.c.l.b16 %v326
        %v379 = vunpack.c.l.b16 %v327
        %v380 = vunpack.c.l.b16 %v328
        %v381 = vunpack.c.l.b16 %v329
        %v382 = vunpack.c.l.b16 %v330
        %v383 = vunpack.c.l.b16 %v331
        %v384 = vunpack.c.l.b16 %v332
        %v385 = vunpack.c.l.b16 %v333
        %v386 = vunpack.c.l.b16 %v334
        %v387 = vunpack.c.l.b16 %v335
        %v388 = vunpack.c.l.b16 %v336
        %v389 = vunpack.c.l.b16 %v337
        %v390 = vunpack.c.l.b16 %v338
        %v391 = vunpack.c.l.b16 %v339
        %v392 = vunpack.c.l.b16 %v340
        %v393 = vpack.c.b16 %v378, %v377
        %v394 = vpack.c.b16 %v380, %v379
        %v395 = vpack.c.b16 %v382, %v381
        %v396 = vpack.c.b16 %v384, %v383
        %v397 = vpack.c.b16 %v386, %v385
        %v398 = vpack.c.b16 %v388, %v387
        %v399 = vpack.c.b16 %v390, %v389
        %v400 = vpack.c.b16 %v392, %v391
        %v421 = vunpack.c.l.b16 %v341
        %v422 = vunpack.c.h.b16 %v341
        %v423 = vunpack.c.l.b16 %v342
        %v424 = vunpack.c.h.b16 %v342
        %v425 = vunpack.c.l.b16 %v343
        %v426 = vunpack.c.h.b16 %v343
        %v427 = vunpack.c.l.b16 %v344
        %v428 = vunpack.c.h.b16 %v344
        %v429 = vunpack.c.l.b16 %v345
        %v430 = vunpack.c.h.b16 %v345
        %v431 = vunpack.c.l.b16 %v346
        %v432 = vunpack.c.h.b16 %v346
        %v433 = vunpack.c.l.b16 %v347
        %v434 = vunpack.c.h.b16 %v347
        %v435 = vunpack.c.l.b16 %v348
        %v436 = vunpack.c.h.b16 %v348
        %v437 = vunpack.c.l.b16 %v349
        %v438 = vunpack.c.h.b16 %v349
        %v439 = vunpack.c.l.b16 %v350
        %v440 = vunpack.c.h.b16 %v350
        %v441 = vunpack.c.l.b16 %v351
        %v442 = vunpack.c.h.b16 %v351
        %v443 = vunpack.c.l.b16 %v352
        %v444 = vunpack.c.h.b16 %v352
        %v445 = vunpack.c.l.b16 %v353
        %v446 = vunpack.c.h.b16 %v353
        %v447 = vunpack.c.l.b16 %v354
        %v448 = vunpack.c.h.b16 %v354
        %v449 = vunpack.c.l.b16 %v355
        %v450 = vunpack.c.h.b16 %v355
        %v451 = vunpack.c.l.b16 %v356
        %v452 = vunpack.c.h.b16 %v356
        %v453 = vunpack.c.l.b16 %v357
        %v454 = vunpack.c.h.b16 %v357
        %v455 = vunpack.c.l.b16 %v358
        %v456 = vunpack.c.h.b16 %v358
        %v457 = vunpack.c.l.b16 %v359
        %v458 = vunpack.c.h.b16 %v359
        %v459 = vunpack.c.l.b16 %v360
        %v460 = vunpack.c.h.b16 %v360
        %v461 = vpack.c.b16 %v429, %v421
        %v462 = vpack.c.b16 %v430, %v422
        %v463 = vpack.c.b16 %v431, %v423
        %v464 = vpack.c.b16 %v432, %v424
        %v465 = vpack.c.b16 %v433, %v425
        %v466 = vpack.c.b16 %v434, %v426
        %v467 = vpack.c.b16 %v435, %v427
        %v468 = vpack.c.b16 %v436, %v428
        %v469 = vpack.c.b16 %v445, %v437
        %v470 = vpack.c.b16 %v446, %v438
        %v471 = vpack.c.b16 %v447, %v439
        %v472 = vpack.c.b16 %v448, %v440
        %v473 = vpack.c.b16 %v449, %v441
        %v474 = vpack.c.b16 %v450, %v442
        %v475 = vpack.c.b16 %v451, %v443
        %v476 = vpack.c.b16 %v452, %v444
        %v477 = vpack.c.b16 %v453, %v453
        %v478 = vpack.c.b16 %v454, %v454
        %v479 = vpack.c.b16 %v455, %v455
        %v480 = vpack.c.b16 %v456, %v456
        %v481 = vpack.c.b16 %v457, %v457
        %v482 = vpack.c.b16 %v458, %v458
        %v483 = vpack.c.b16 %v459, %v459
        %v484 = vpack.c.b16 %v460, %v460
        %vm501 = vcmask 326656
        %v503 = vsel %vm501, %v393, 0
        %v506 = vsel %vm501, %v394, 0
        %v509 = vsel %vm501, %v395, 0
        %v512 = vsel %vm501, %v396, 0
        %v515 = vsel %vm501, %v397, 0
        %v518 = vsel %vm501, %v398, 0
        %v521 = vsel %vm501, %v399, 0
        %v524 = vsel %vm501, %v400, 0
        %vm526 = vcmask 1043456
        %v528 = vsel %vm526, %v477, 0
        %v531 = vsel %vm526, %v478, 0
        %v534 = vsel %vm526, %v479, 0
        %v537 = vsel %vm526, %v480, 0
        %v540 = vsel %vm526, %v481, 0
        %v543 = vsel %vm526, %v482, 0
        %v546 = vsel %vm526, %v483, 0
        %v549 = vsel %vm526, %v484, 0
        %551 = vmatprep.subr.bf16.mxu0 0
        %552 = vmatpush1.bf16.msra.mxu0 0
        %553 = vmatprep.subr.bf16.mxu0 0
        %554 = vmatpush1.bf16.msra.mxu0 0
        %555 = vmatprep.subr.bf16.mxu0 0
        %556 = vmatpush1.bf16.msra.mxu0 0
        %557 = vmatprep.subr.bf16.mxu0 0
        %558 = vmatpush1.bf16.msra.mxu0 0
        %559 = vmatprep.subr.bf16.mxu0 0
        %560 = vmatpush1.bf16.msra.mxu0 0
        %561 = vmatprep.subr.bf16.mxu0 %v531
        %562 = vmatpush1.bf16.msra.mxu0 %v528
        %563 = vmatprep.subr.bf16.mxu0 %v470
        %564 = vmatpush1.bf16.msra.mxu0 %v469
        %565 = vmatprep.subr.bf16.mxu0 %v462
        %566 = vmatpush1.bf16.msra.mxu0 %v461
        %567 = vmatprep.subr.bf16.mxu0 0
        %568 = vmatpush2.bf16.msra.mxu0 0
        %569 = vmatprep.subr.bf16.mxu0 0
        %570 = vmatpush2.bf16.msra.mxu0 0
        %571 = vmatprep.subr.bf16.mxu0 0
        %572 = vmatpush2.bf16.msra.mxu0 0
        %573 = vmatprep.subr.bf16.mxu0 0
        %574 = vmatpush2.bf16.msra.mxu0 0
        %575 = vmatprep.subr.bf16.mxu0 0
        %576 = vmatpush2.bf16.msra.mxu0 0
        %577 = vmatprep.subr.bf16.mxu0 0
        %578 = vmatpush2.bf16.msra.mxu0 0
        %579 = vmatprep.subr.bf16.mxu0 0
        %580 = vmatpush2.bf16.msra.mxu0 0
        %581 = vmatprep.subr.bf16.mxu0 0
        %582 = vmatpush2.bf16.msra.mxu0 0
        %583 = vmatprep.mubr.bf16.mxu0 0
        %584 = vmatmul.mubr.bf16.gmra.mxu0 %v503
        %v585 = vpop.f32.mrf.mxu0
        %v586 = vadd.f32 0.0, %v585
        %v587 = vpop.f32.mrf.mxu0
        %v588 = vadd.f32 0.0, %v587
        %v589 = vpop.f32.mrf.mxu0
        %v590 = vpop.f32.mrf.mxu0
        %591 = vmatprep.mubr.bf16.mxu0 0
        %592 = vmatmul.mubr.bf16.gmra.mxu0 %v506
        %v593 = vpop.f32.mrf.mxu0
        %v594 = vpop.f32.mrf.mxu0
        %v595 = vpop.f32.mrf.mxu0
        %v596 = vpop.f32.mrf.mxu0
        %597 = vmatprep.mubr.bf16.mxu0 0
        %598 = vmatmul.mubr.bf16.gmra.mxu0 %v509
        %v599 = vpop.f32.mrf.mxu0
        %v600 = vpop.f32.mrf.mxu0
        %v601 = vpop.f32.mrf.mxu0
        %v602 = vpop.f32.mrf.mxu0
        %603 = vmatprep.mubr.bf16.mxu0 0
        %604 = vmatmul.mubr.bf16.gmra.mxu0 %v512
        %v605 = vpop.f32.mrf.mxu0
        %v606 = vpop.f32.mrf.mxu0
        %v607 = vpop.f32.mrf.mxu0
        %v608 = vpop.f32.mrf.mxu0
        %609 = vmatprep.mubr.bf16.mxu0 0
        %610 = vmatmul.mubr.bf16.gmra.mxu0 %v515
        %v611 = vpop.f32.mrf.mxu0
        %v612 = vpop.f32.mrf.mxu0
        %v613 = vpop.f32.mrf.mxu0
        %v614 = vpop.f32.mrf.mxu0
        %615 = vmatprep.mubr.bf16.mxu0 0
        %616 = vmatmul.mubr.bf16.gmra.mxu0 %v518
        %v617 = vpop.f32.mrf.mxu0
        %v618 = vpop.f32.mrf.mxu0
        %v619 = vpop.f32.mrf.mxu0
        %v620 = vpop.f32.mrf.mxu0
        %621 = vmatprep.mubr.bf16.mxu0 0
        %622 = vmatmul.mubr.bf16.gmra.mxu0 %v521
        %v623 = vpop.f32.mrf.mxu0
        %v624 = vpop.f32.mrf.mxu0
        %v625 = vpop.f32.mrf.mxu0
        %v626 = vpop.f32.mrf.mxu0
        %627 = vmatprep.mubr.bf16.mxu0 0
        %628 = vmatmul.mubr.bf16.gmra.mxu0 %v524
        %v629 = vpop.f32.mrf.mxu0
        %v630 = vpop.f32.mrf.mxu0
        %v631 = vpop.f32.mrf.mxu0
        %v632 = vpop.f32.mrf.mxu0
        %633 = vdwg.mxu0
        %634 = vmatprep.subr.bf16.mxu0 0
        %635 = vmatpush1.bf16.msra.mxu0 0
        %636 = vmatprep.subr.bf16.mxu0 0
        %637 = vmatpush1.bf16.msra.mxu0 0
        %638 = vmatprep.subr.bf16.mxu0 0
        %639 = vmatpush1.bf16.msra.mxu0 0
        %640 = vmatprep.subr.bf16.mxu0 0
        %641 = vmatpush1.bf16.msra.mxu0 0
        %642 = vmatprep.subr.bf16.mxu0 0
        %643 = vmatpush1.bf16.msra.mxu0 0
        %644 = vmatprep.subr.bf16.mxu0 %v537
        %645 = vmatpush1.bf16.msra.mxu0 %v534
        %646 = vmatprep.subr.bf16.mxu0 %v472
        %647 = vmatpush1.bf16.msra.mxu0 %v471
        %648 = vmatprep.subr.bf16.mxu0 %v464
        %649 = vmatpush1.bf16.msra.mxu0 %v463
        %650 = vmatprep.subr.bf16.mxu0 0
        %651 = vmatpush2.bf16.msra.mxu0 0
        %652 = vmatprep.subr.bf16.mxu0 0
        %653 = vmatpush2.bf16.msra.mxu0 0
        %654 = vmatprep.subr.bf16.mxu0 0
        %655 = vmatpush2.bf16.msra.mxu0 0
        %656 = vmatprep.subr.bf16.mxu0 0
        %657 = vmatpush2.bf16.msra.mxu0 0
        %658 = vmatprep.subr.bf16.mxu0 0
        %659 = vmatpush2.bf16.msra.mxu0 0
        %660 = vmatprep.subr.bf16.mxu0 0
        %661 = vmatpush2.bf16.msra.mxu0 0
        %662 = vmatprep.subr.bf16.mxu0 0
        %663 = vmatpush2.bf16.msra.mxu0 0
        %664 = vmatprep.subr.bf16.mxu0 0
        %665 = vmatpush2.bf16.msra.mxu0 0
        %666 = vmatprep.mubr.bf16.mxu0 0
        %667 = vmatmul.mubr.bf16.gmra.mxu0 %v503
        %v668 = vpop.f32.mrf.mxu0
        %v669 = vadd.f32 0.0, %v668
        %v670 = vpop.f32.mrf.mxu0
        %v671 = vadd.f32 0.0, %v670
        %v672 = vpop.f32.mrf.mxu0
        %v673 = vpop.f32.mrf.mxu0
        %674 = vmatprep.mubr.bf16.mxu0 0
        %675 = vmatmul.mubr.bf16.gmra.mxu0 %v506
        %v676 = vpop.f32.mrf.mxu0
        %v677 = vpop.f32.mrf.mxu0
        %v678 = vpop.f32.mrf.mxu0
        %v679 = vpop.f32.mrf.mxu0
        %680 = vmatprep.mubr.bf16.mxu0 0
        %681 = vmatmul.mubr.bf16.gmra.mxu0 %v509
        %v682 = vpop.f32.mrf.mxu0
        %v683 = vpop.f32.mrf.mxu0
        %v684 = vpop.f32.mrf.mxu0
        %v685 = vpop.f32.mrf.mxu0
        %686 = vmatprep.mubr.bf16.mxu0 0
        %687 = vmatmul.mubr.bf16.gmra.mxu0 %v512
        %v688 = vpop.f32.mrf.mxu0
        %v689 = vpop.f32.mrf.mxu0
        %v690 = vpop.f32.mrf.mxu0
        %v691 = vpop.f32.mrf.mxu0
        %692 = vmatprep.mubr.bf16.mxu0 0
        %693 = vmatmul.mubr.bf16.gmra.mxu0 %v515
        %v694 = vpop.f32.mrf.mxu0
        %v695 = vpop.f32.mrf.mxu0
        %v696 = vpop.f32.mrf.mxu0
        %v697 = vpop.f32.mrf.mxu0
        %698 = vmatprep.mubr.bf16.mxu0 0
        %699 = vmatmul.mubr.bf16.gmra.mxu0 %v518
        %v700 = vpop.f32.mrf.mxu0
        %v701 = vpop.f32.mrf.mxu0
        %v702 = vpop.f32.mrf.mxu0
        %v703 = vpop.f32.mrf.mxu0
        %704 = vmatprep.mubr.bf16.mxu0 0
        %705 = vmatmul.mubr.bf16.gmra.mxu0 %v521
        %v706 = vpop.f32.mrf.mxu0
        %v707 = vpop.f32.mrf.mxu0
        %v708 = vpop.f32.mrf.mxu0
        %v709 = vpop.f32.mrf.mxu0
        %710 = vmatprep.mubr.bf16.mxu0 0
        %711 = vmatmul.mubr.bf16.gmra.mxu0 %v524
        %v712 = vpop.f32.mrf.mxu0
        %v713 = vpop.f32.mrf.mxu0
        %v714 = vpop.f32.mrf.mxu0
        %v715 = vpop.f32.mrf.mxu0
        %716 = vdwg.mxu0
        %717 = vmatprep.subr.bf16.mxu0 0
        %718 = vmatpush1.bf16.msra.mxu0 0
        %719 = vmatprep.subr.bf16.mxu0 0
        %720 = vmatpush1.bf16.msra.mxu0 0
        %721 = vmatprep.subr.bf16.mxu0 0
        %722 = vmatpush1.bf16.msra.mxu0 0
        %723 = vmatprep.subr.bf16.mxu0 0
        %724 = vmatpush1.bf16.msra.mxu0 0
        %725 = vmatprep.subr.bf16.mxu0 0
        %726 = vmatpush1.bf16.msra.mxu0 0
        %727 = vmatprep.subr.bf16.mxu0 %v543
        %728 = vmatpush1.bf16.msra.mxu0 %v540
        %729 = vmatprep.subr.bf16.mxu0 %v474
        %730 = vmatpush1.bf16.msra.mxu0 %v473
        %731 = vmatprep.subr.bf16.mxu0 %v466
        %732 = vmatpush1.bf16.msra.mxu0 %v465
        %733 = vmatprep.subr.bf16.mxu0 0
        %734 = vmatpush2.bf16.msra.mxu0 0
        %735 = vmatprep.subr.bf16.mxu0 0
        %736 = vmatpush2.bf16.msra.mxu0 0
        %737 = vmatprep.subr.bf16.mxu0 0
        %738 = vmatpush2.bf16.msra.mxu0 0
        %739 = vmatprep.subr.bf16.mxu0 0
        %740 = vmatpush2.bf16.msra.mxu0 0
        %741 = vmatprep.subr.bf16.mxu0 0
        %742 = vmatpush2.bf16.msra.mxu0 0
        %743 = vmatprep.subr.bf16.mxu0 0
        %744 = vmatpush2.bf16.msra.mxu0 0
        %745 = vmatprep.subr.bf16.mxu0 0
        %746 = vmatpush2.bf16.msra.mxu0 0
        %747 = vmatprep.subr.bf16.mxu0 0
        %748 = vmatpush2.bf16.msra.mxu0 0
        %749 = vmatprep.mubr.bf16.mxu0 0
        %750 = vmatmul.mubr.bf16.gmra.mxu0 %v503
        %v751 = vpop.f32.mrf.mxu0
        %v752 = vadd.f32 0.0, %v751
        %v753 = vpop.f32.mrf.mxu0
        %v754 = vadd.f32 0.0, %v753
        %v755 = vpop.f32.mrf.mxu0
        %v756 = vpop.f32.mrf.mxu0
        %757 = vmatprep.mubr.bf16.mxu0 0
        %758 = vmatmul.mubr.bf16.gmra.mxu0 %v506
        %v759 = vpop.f32.mrf.mxu0
        %v760 = vpop.f32.mrf.mxu0
        %v761 = vpop.f32.mrf.mxu0
        %v762 = vpop.f32.mrf.mxu0
        %763 = vmatprep.mubr.bf16.mxu0 0
        %764 = vmatmul.mubr.bf16.gmra.mxu0 %v509
        %v765 = vpop.f32.mrf.mxu0
        %v766 = vpop.f32.mrf.mxu0
        %v767 = vpop.f32.mrf.mxu0
        %v768 = vpop.f32.mrf.mxu0
        %769 = vmatprep.mubr.bf16.mxu0 0
        %770 = vmatmul.mubr.bf16.gmra.mxu0 %v512
        %v771 = vpop.f32.mrf.mxu0
        %v772 = vpop.f32.mrf.mxu0
        %v773 = vpop.f32.mrf.mxu0
        %v774 = vpop.f32.mrf.mxu0
        %775 = vmatprep.mubr.bf16.mxu0 0
        %776 = vmatmul.mubr.bf16.gmra.mxu0 %v515
        %v777 = vpop.f32.mrf.mxu0
        %v778 = vpop.f32.mrf.mxu0
        %v779 = vpop.f32.mrf.mxu0
        %v780 = vpop.f32.mrf.mxu0
        %781 = vmatprep.mubr.bf16.mxu0 0
        %782 = vmatmul.mubr.bf16.gmra.mxu0 %v518
        %v783 = vpop.f32.mrf.mxu0
        %v784 = vpop.f32.mrf.mxu0
        %v785 = vpop.f32.mrf.mxu0
        %v786 = vpop.f32.mrf.mxu0
        %787 = vmatprep.mubr.bf16.mxu0 0
        %788 = vmatmul.mubr.bf16.gmra.mxu0 %v521
        %v789 = vpop.f32.mrf.mxu0
        %v790 = vpop.f32.mrf.mxu0
        %v791 = vpop.f32.mrf.mxu0
        %v792 = vpop.f32.mrf.mxu0
        %793 = vmatprep.mubr.bf16.mxu0 0
        %794 = vmatmul.mubr.bf16.gmra.mxu0 %v524
        %v795 = vpop.f32.mrf.mxu0
        %v796 = vpop.f32.mrf.mxu0
        %v797 = vpop.f32.mrf.mxu0
        %v798 = vpop.f32.mrf.mxu0
        %799 = vdwg.mxu0
        %800 = vmatprep.subr.bf16.mxu0 0
        %801 = vmatpush1.bf16.msra.mxu0 0
        %802 = vmatprep.subr.bf16.mxu0 0
        %803 = vmatpush1.bf16.msra.mxu0 0
        %804 = vmatprep.subr.bf16.mxu0 0
        %805 = vmatpush1.bf16.msra.mxu0 0
        %806 = vmatprep.subr.bf16.mxu0 0
        %807 = vmatpush1.bf16.msra.mxu0 0
        %808 = vmatprep.subr.bf16.mxu0 0
        %809 = vmatpush1.bf16.msra.mxu0 0
        %810 = vmatprep.subr.bf16.mxu0 %v549
        %811 = vmatpush1.bf16.msra.mxu0 %v546
        %812 = vmatprep.subr.bf16.mxu0 %v476
        %813 = vmatpush1.bf16.msra.mxu0 %v475
        %814 = vmatprep.subr.bf16.mxu0 %v468
        %815 = vmatpush1.bf16.msra.mxu0 %v467
        %816 = vmatprep.subr.bf16.mxu0 0
        %817 = vmatpush2.bf16.msra.mxu0 0
        %818 = vmatprep.subr.bf16.mxu0 0
        %819 = vmatpush2.bf16.msra.mxu0 0
        %820 = vmatprep.subr.bf16.mxu0 0
        %821 = vmatpush2.bf16.msra.mxu0 0
        %822 = vmatprep.subr.bf16.mxu0 0
        %823 = vmatpush2.bf16.msra.mxu0 0
        %824 = vmatprep.subr.bf16.mxu0 0
        %825 = vmatpush2.bf16.msra.mxu0 0
        %826 = vmatprep.subr.bf16.mxu0 0
        %827 = vmatpush2.bf16.msra.mxu0 0
        %828 = vmatprep.subr.bf16.mxu0 0
        %829 = vmatpush2.bf16.msra.mxu0 0
        %830 = vmatprep.subr.bf16.mxu0 0
        %831 = vmatpush2.bf16.msra.mxu0 0
        %832 = vmatprep.mubr.bf16.mxu0 0
        %833 = vmatmul.mubr.bf16.gmra.mxu0 %v503
        %v834 = vpop.f32.mrf.mxu0
        %v835 = vadd.f32 0.0, %v834
        %v836 = vpop.f32.mrf.mxu0
        %v837 = vadd.f32 0.0, %v836
        %v838 = vpop.f32.mrf.mxu0
        %v839 = vpop.f32.mrf.mxu0
        %840 = vmatprep.mubr.bf16.mxu0 0
        %841 = vmatmul.mubr.bf16.gmra.mxu0 %v506
        %v842 = vpop.f32.mrf.mxu0
        %v843 = vpop.f32.mrf.mxu0
        %v844 = vpop.f32.mrf.mxu0
        %v845 = vpop.f32.mrf.mxu0
        %846 = vmatprep.mubr.bf16.mxu0 0
        %847 = vmatmul.mubr.bf16.gmra.mxu0 %v509
        %v848 = vpop.f32.mrf.mxu0
        %v849 = vpop.f32.mrf.mxu0
        %v850 = vpop.f32.mrf.mxu0
        %v851 = vpop.f32.mrf.mxu0
        %852 = vmatprep.mubr.bf16.mxu0 0
        %853 = vmatmul.mubr.bf16.gmra.mxu0 %v512
        %v854 = vpop.f32.mrf.mxu0
        %v855 = vpop.f32.mrf.mxu0
        %v856 = vpop.f32.mrf.mxu0
        %v857 = vpop.f32.mrf.mxu0
        %858 = vmatprep.mubr.bf16.mxu0 0
        %859 = vmatmul.mubr.bf16.gmra.mxu0 %v515
        %v860 = vpop.f32.mrf.mxu0
        %v861 = vpop.f32.mrf.mxu0
        %v862 = vpop.f32.mrf.mxu0
        %v863 = vpop.f32.mrf.mxu0
        %864 = vmatprep.mubr.bf16.mxu0 0
        %865 = vmatmul.mubr.bf16.gmra.mxu0 %v518
        %v866 = vpop.f32.mrf.mxu0
        %v867 = vpop.f32.mrf.mxu0
        %v868 = vpop.f32.mrf.mxu0
        %v869 = vpop.f32.mrf.mxu0
        %870 = vmatprep.mubr.bf16.mxu0 0
        %871 = vmatmul.mubr.bf16.gmra.mxu0 %v521
        %v872 = vpop.f32.mrf.mxu0
        %v873 = vpop.f32.mrf.mxu0
        %v874 = vpop.f32.mrf.mxu0
        %v875 = vpop.f32.mrf.mxu0
        %876 = vmatprep.mubr.bf16.mxu0 0
        %877 = vmatmul.mubr.bf16.gmra.mxu0 %v524
        %v878 = vpop.f32.mrf.mxu0
        %v879 = vpop.f32.mrf.mxu0
        %v880 = vpop.f32.mrf.mxu0
        %v881 = vpop.f32.mrf.mxu0
        %882 = vdwg.mxu0
        %v883 = vld [vmem:[%s308] sm:$0xff]
        %v884 = vld [vmem:[%s313] sm:$0xff]
        %886 = vset.pattern.permute.xlu0 0
        %887 = vperm.xlu0 %886, %v883
        %v888 = vpop.permute.xlu0 %887
        %v890 = vmul.f32 %v586, %v888
        %v891 = vmul.f32 %v588, %v888
        %v892 = vmul.f32 %v669, %v888
        %v893 = vmul.f32 %v671, %v888
        %v894 = vmul.f32 %v752, %v888
        %v895 = vmul.f32 %v754, %v888
        %v896 = vmul.f32 %v835, %v888
        %v897 = vmul.f32 %v837, %v888
        %899 = vset.pattern.permute.xlu0 0
        %900 = vperm.xlu0 %899, %v884
        %v901 = vpop.permute.xlu0 %900
        %v903 = vadd.f32 %v890, %v901
        %v904 = vadd.f32 %v891, %v901
        %v905 = vadd.f32 %v892, %v901
        %v906 = vadd.f32 %v893, %v901
        %v907 = vadd.f32 %v894, %v901
        %v908 = vadd.f32 %v895, %v901
        %v909 = vadd.f32 %v896, %v901
        %v910 = vadd.f32 %v897, %v901
        %v911 = vmax.f32 %v903, 0.0
        %v912 = vmax.f32 %v904, 0.0
        %v913 = vmax.f32 %v905, 0.0
        %v914 = vmax.f32 %v906, 0.0
        %v915 = vmax.f32 %v907, 0.0
        %v916 = vmax.f32 %v908, 0.0
        %v917 = vmax.f32 %v909, 0.0
        %v918 = vmax.f32 %v910, 0.0
        %919 = vst [vmem:[%s322] sm:$0xff] %v911
        %920 = vst [vmem:[%s322 + $0x8] sm:$0xff] %v912
        %921 = vst [vmem:[%s322 + $0x10] sm:$0xff] %v913
        %922 = vst [vmem:[%s322 + $0x18] sm:$0xff] %v914
        %923 = vst [vmem:[%s322 + $0x20] sm:$0xff] %v915
        %924 = vst [vmem:[%s322 + $0x28] sm:$0xff] %v916
        %925 = vst [vmem:[%s322 + $0x30] sm:$0xff] %v917
        %926 = vst [vmem:[%s322 + $0x38] sm:$0xff] %v918
        %s927 = smul.u32 8, %s20
        %p928 = scmp.lt.s32.totalorder %s19, 1
        %s929 = scalar_select %p928, %s19, 1
        %p930 = scmp.lt.s32.totalorder %s927, 7
        %s931 = scalar_select %p930, %s927, 7
        %s932 = smul.addr %s929, 8
        %s933 = sadd.s32 %s931, %s932
        %s934 = smul.addr %s933, 8
        %s935 = scalar_lea.vmem %s4, %s934
        // Predicated region
        $region60: #{up_conv2d_block_cbn.3} parent=54 // pred_check
          %p936 = pneg %p148
        $region61: #{up_conv2d_block_cbn.3} parent=54 // pred_check_branch
          %938 = sbr.rel (%p936) target = $region63
        $region62: #{up_conv2d_block_cbn.3} parent=54 // pred_region
          %s939 = smul.u32 8, %s20
        $region63: #{up_conv2d_block_cbn.3} parent=54 // pred_fallthru
          _
      $region55: #{up_conv2d_block_cbn.3} parent=5 // pred_fallthru
        _
      %p940 = scmp.le.s32.totalorder 2, %s10
      // Predicated region
      $region64: #{up_conv2d_block_cbn.3} parent=5 // pred_check
        %p941 = pneg %p940
      $region65: #{up_conv2d_block_cbn.3} parent=5 // pred_check_branch
        %943 = sbr.rel (%p941) target = $region67
      $region66: #{up_conv2d_block_cbn.3} parent=5 // pred_region
        %s944 = ssub.s32 %s10, 2
        // Predicated region
        $region68: #{up_conv2d_block_cbn.3} parent=66 // pred_check
          %p945 = pneg %p154
        $region69: #{up_conv2d_block_cbn.3} parent=66 // pred_check_branch
          %947 = sbr.rel (%p945) target = $region71
        $region70: #{up_conv2d_block_cbn.3} parent=66 // pred_region
          %s948 = smul.u32 8, %s22
          %p949 = scmp.lt.s32.totalorder %s21, 1
          %s950 = scalar_select %p949, %s21, 1
          %p951 = scmp.lt.s32.totalorder %s948, 7
          %s952 = scalar_select %p951, %s948, 7
          %s953 = smul.addr %s950, 8
          %s954 = sadd.s32 %s952, %s953
          %s955 = smul.addr %s954, 8
          %s956 = scalar_lea.vmem %s4, %s955
        $region71: #{up_conv2d_block_cbn.3} parent=66 // pred_fallthru
          _
      $region67: #{up_conv2d_block_cbn.3} parent=5 // pred_fallthru
        _
    $region6: #{up_conv2d_block_cbn.3} parent=1 // loop_footer
      %s14 = sadd.s32 1, %s10
    $region7: #{up_conv2d_block_cbn.3} parent=1 // loop_footer_branch
      %9 = sbr.rel target = $region3
    $region8: #{up_conv2d_block_cbn.3} parent=1 // loop_exit
      _

</llo_original>
